<compile_context>
chip_gen: v6e
topology: v6e:2x2x1
jax: 0.10.0
libtpu: 0.0.40
codegen_flags: <defaults>
</compile_context>

<pallas_src>
import functools

import jax
import jax.numpy as jnp
from jax.experimental import pallas as pl
from jax.experimental.pallas import tpu as pltpu

_LANE = 128
_SUB = 8


def _round_up(x, m):
    return (x + m - 1) // m * m


def _vmem_capacity_bytes():
    """Physical VMEM of the local TPU generation (v5e/v6e: 128 MiB, v7x: 64 MiB)."""
    try:
        cap = getattr(pltpu.get_tpu_info(), "vmem_capacity_bytes", None)
        if cap:
            return int(cap)
    except Exception:
        pass
    return 64 * 1024 * 1024  # conservative fallback (v7x-sized)


def _autoencoder_kernel(x_ref, w_enc_ref, b_enc_ref, w_dec_ref, b_dec_ref,
                        out_ref, hsum_ref, *, n_batch, tile_b):
    """One batch tile: encoder, per-tile hidden sum, decoder."""
    i = pl.program_id(0)

    # ---- encoder: sigmoid(x @ W_enc + b_enc) -----------------------------
    # bf16 MXU operands, f32 accumulation.  sigmoid(z) == 0.5*(tanh(z/2)+1):
    # one EUP tanh instead of exp + divide.
    x = x_ref[...].astype(jnp.bfloat16)                         # (tb, N)
    pre = jnp.dot(x, w_enc_ref[...],
                  preferred_element_type=jnp.float32)           # (tb, H) f32
    hidden = 0.5 * (jnp.tanh(0.5 * (pre + b_enc_ref[...])) + 1.0)

    # ---- per-tile hidden sum; mask rows past the real batch end ----------
    # The last tile may overhang B: Pallas drops out-of-bounds writes, but the
    # OOB rows of the input block are garbage, so keep them out of the sums.
    row = i * tile_b + jax.lax.broadcasted_iota(jnp.int32, (tile_b, 1), 0)
    hidden_valid = jnp.where(row < n_batch, hidden, 0.0)
    hsum_ref[...] = jnp.sum(hidden_valid, axis=0, keepdims=True)[None]

    # ---- decoder: hidden @ W_dec + b_dec ----------------------------------
    # NOTE: hidden is quantized to bf16 for the MXU, so decoded error vs an
    # f32 reference includes activation rounding as well as weight rounding.
    dec = jnp.dot(hidden.astype(jnp.bfloat16), w_dec_ref[...],
                  preferred_element_type=jnp.float32)           # (tb, N)
    out_ref[...] = (dec + b_dec_ref[...]).astype(out_ref.dtype)


def autoencoder_forward(x, w_enc, b_enc, w_dec, b_dec,
                        sparsity_target=0.05, tile_b=None):
    """Returns (decoded, sparsity_loss) mirroring Autoencoder.forward.

    Weights are stored (fan_in, fan_out) so the kernel computes x @ W + b
    (equivalent to PyTorch's x @ W.T with W of shape (out, in)).
    """
    B, n_in = x.shape
    n_hidden = w_enc.shape[1]

    # Feature dims padded only when not lane-aligned; batch never padded.
    # TODO(synk): when MXU-bound on v6e/v7x (large n_hidden), align feature
    # pads to multiples of 256 to fill the 2x256x256 MXU instead of 128.
    n_in_p = _round_up(n_in, _LANE)
    n_hid_p = _round_up(n_hidden, _LANE)

    x_in = x if n_in_p == n_in else jnp.pad(x, ((0, 0), (0, n_in_p - n_in)))
    w_enc_p = jnp.pad(w_enc, ((0, n_in_p - n_in), (0, n_hid_p - n_hidden))
                      ).astype(jnp.bfloat16)
    w_dec_p = jnp.pad(w_dec, ((0, n_hid_p - n_hidden), (0, n_in_p - n_in))
                      ).astype(jnp.bfloat16)
    b_enc_p = jnp.pad(jnp.asarray(b_enc, jnp.float32).reshape(1, n_hidden),
                      ((0, 0), (0, n_hid_p - n_hidden)))
    b_dec_p = jnp.pad(jnp.asarray(b_dec, jnp.float32).reshape(1, n_in),
                      ((0, 0), (0, n_in_p - n_in)))

    x_bytes = jnp.dtype(x.dtype).itemsize
    out_bytes = x_bytes

    # Generation-aware VMEM budget and default batch tile.
    vmem_cap = _vmem_capacity_bytes()
    vmem_limit = (vmem_cap * 3) // 4          # ~96 MiB v5e/v6e, ~48 MiB v7x
    if tile_b is None:
        tile_b = 1024 if vmem_cap >= 128 * 1024 * 1024 else 512

    def _budget(tb, weight_bufs):
        resident = weight_bufs * (2 * n_in_p * n_hid_p * 2        # bf16 weights
                                  + (n_in_p + n_hid_p) * 4)       # f32 biases
        streamed = 2 * tb * n_in_p * (x_bytes + out_bytes)        # x+decoded, 2-deep
        hsums = 2 * n_hid_p * 4
        return resident + streamed + hsums + (1 << 20)            # +1 MiB headroom

    def _pick_tb(weight_bufs):
        tb = min(_round_up(tile_b, _SUB), _round_up(B, _SUB))
        while _budget(tb, weight_bufs) > vmem_limit and tb > _SUB:
            tb = max(_SUB, ((tb // 2) // _SUB) * _SUB)
        if _budget(tb, weight_bufs) > vmem_limit:
            # TODO(synk): for weights this large (esp. v7x, 64 MiB VMEM), add a
            # hidden/K grid axis with streamed weight tiles + f32 accumulator.
            raise ValueError("resident bf16 weights do not fit the VMEM budget")
        return B if tb >= B else tb          # full-batch block is always legal

    def _call(weight_bufs):
        tb = _pick_tb(weight_bufs)
        n_tiles = pl.cdiv(B, tb)
        kernel = functools.partial(_autoencoder_kernel, n_batch=B, tile_b=tb)
        # Weights/biases have a constant index_map: request a single VMEM copy
        # instead of the default double buffer (halves resident footprint).
        wkw = {"pipeline_mode": pl.Buffered(1)} if weight_bufs == 1 else {}

        grid_spec = pltpu.PrefetchScalarGridSpec(
            num_scalar_prefetch=0,
            grid=(n_tiles,),
            in_specs=[
                # TODO(synk): sweep pipeline_mode=pl.Buffered(3) on x once tb
                # is retuned per generation (few-% win when mem-bound).
                pl.BlockSpec((tb, n_in_p), lambda i: (i, 0)),              # x
                pl.BlockSpec((n_in_p, n_hid_p), lambda i: (0, 0), **wkw),  # W_enc
                pl.BlockSpec((1, n_hid_p), lambda i: (0, 0), **wkw),       # b_enc
                pl.BlockSpec((n_hid_p, n_in_p), lambda i: (0, 0), **wkw),  # W_dec
                pl.BlockSpec((1, n_in_p), lambda i: (0, 0), **wkw),        # b_dec
            ],
            out_specs=(
                pl.BlockSpec((tb, n_in_p), lambda i: (i, 0)),              # decoded
                pl.BlockSpec((1, 1, n_hid_p), lambda i: (i, 0, 0)),        # hidden sums
            ),
        )

        rows = n_tiles * tb
        flops = 4 * rows * n_in_p * n_hid_p                 # 2 matmuls, 2 flop/MAC
        transcendentals = rows * n_hid_p                    # one tanh per activation
        bytes_accessed = (B * n_in_p * (x_bytes + out_bytes)
                          + 2 * n_in_p * n_hid_p * 2 + (n_in_p + n_hid_p) * 4
                          + n_tiles * n_hid_p * 4)

        return pl.pallas_call(
            kernel,
            out_shape=(
                jax.ShapeDtypeStruct((B, n_in_p), x.dtype),
                jax.ShapeDtypeStruct((n_tiles, 1, n_hid_p), jnp.float32),
            ),
            grid_spec=grid_spec,
            compiler_params=pltpu.CompilerParams(
                # No cross-tile carry -> batch axis is parallel (v7x megacore).
                dimension_semantics=("parallel",),
                vmem_limit_bytes=int(vmem_limit),
            ),
            cost_estimate=pl.CostEstimate(flops=flops,
                                          transcendentals=transcendentals,
                                          bytes_accessed=bytes_accessed),
        )(x_in, w_enc_p, b_enc_p, w_dec_p, b_dec_p)

    try:
        decoded_p, hsums = _call(1)
    except Exception:
        # Installed Pallas rejected single-buffered pipeline_mode: fall back to
        # the default double-buffered resident weights (accounting adjusted).
        decoded_p, hsums = _call(2)

    # KL(p || mean_batch(hidden)) summed over real hidden units.  O(n_hidden)
    # scalar work done in the wrapper so the kernel's batch axis stays
    # "parallel".  Matches PyTorch exactly, including the absence of an epsilon
    # clamp on q (saturated units produce +/-inf just like the reference).
    q = jnp.sum(hsums, axis=(0, 1))[:n_hidden] / jnp.float32(B)
    p = jnp.float32(sparsity_target)
    kl = p * jnp.log(p / q) + (1.0 - p) * jnp.log((1.0 - p) / (1.0 - q))
    sparsity_loss = jnp.sum(kl)

    decoded = decoded_p if n_in_p == n_in else decoded_p[:, :n_in]
    return decoded, sparsity_loss


def init_params(key, n_in, n_hidden, dtype=jnp.float32):
    """Deterministic PyTorch-style init: U(-1/sqrt(fan_in), 1/sqrt(fan_in))."""
    k1, k2, k3, k4 = jax.random.split(key, 4)
    bound_enc = 1.0 / (n_in ** 0.5)
    bound_dec = 1.0 / (n_hidden ** 0.5)
    w_enc = jax.random.uniform(k1, (n_in, n_hidden), dtype,
                               minval=-bound_enc, maxval=bound_enc)
    b_enc = jax.random.uniform(k2, (1, n_hidden), dtype,
                               minval=-bound_enc, maxval=bound_enc)
    w_dec = jax.random.uniform(k3, (n_hidden, n_in), dtype,
                               minval=-bound_dec, maxval=bound_dec)
    b_dec = jax.random.uniform(k4, (1, n_in), dtype,
                               minval=-bound_dec, maxval=bound_dec)
    return w_enc, b_enc, w_dec, b_dec


def reference_forward(x, w_enc, b_enc, w_dec, b_dec, sparsity_target=0.05):
    hidden = jax.nn.sigmoid(x @ w_enc + b_enc)
    q = jnp.mean(hidden, axis=0)
    p = sparsity_target
    kl = p * jnp.log(p / q) + (1 - p) * jnp.log((1 - p) / (1 - q))
    return hidden @ w_dec + b_dec, jnp.sum(kl)


if __name__ == "__main__":
    # Small shapes consistent with the module defaults (n_hidden=10); B chosen
    # NOT a multiple of the batch tile so the partial-tile row masking is
    # exercised (last tile overhangs the batch).
    B, n_in, n_hidden = 72, 16, 10

    key = jax.random.PRNGKey(0)
    kx, kp = jax.random.split(key)
    x = jax.random.uniform(kx, (B, n_in), jnp.float32)  # (0,1), like scaled data
    w_enc, b_enc, w_dec, b_dec = init_params(kp, n_in, n_hidden)

    decoded, sparsity_loss = autoencoder_forward(
        x, w_enc, b_enc, w_dec, b_dec, sparsity_target=0.05, tile_b=32)
    jax.block_until_ready((decoded, sparsity_loss))

    ref_dec, ref_sp = reference_forward(x, w_enc, b_enc, w_dec, b_dec)
    assert decoded.shape == (B, n_in)
    # bf16 MXU operands vs f32 reference -> relaxed tolerances.
    assert jnp.allclose(decoded, ref_dec, atol=2e-2, rtol=2e-2), (
        float(jnp.max(jnp.abs(decoded - ref_dec))))
    assert jnp.allclose(sparsity_loss, ref_sp, atol=5e-2, rtol=2e-2), (
        float(sparsity_loss), float(ref_sp))

    print("KERNEL_OK")
</pallas_src>

<mosaic_0001>
module attributes {stable_mosaic.version = 11 : i64} {
  func.func @_autoencoder_kernel(%arg0: i32, %arg1: memref<32x128xf32, #tpu.memory_space<vmem>>, %arg2: memref<128x128xbf16, #tpu.memory_space<vmem>>, %arg3: memref<1x128xf32, #tpu.memory_space<vmem>>, %arg4: memref<128x128xbf16, #tpu.memory_space<vmem>>, %arg5: memref<1x128xf32, #tpu.memory_space<vmem>>, %arg6: memref<32x128xf32, #tpu.memory_space<vmem>>, %arg7: memref<1x1x128xf32, #tpu.memory_space<vmem>>) attributes {dimension_semantics = [#tpu.dimension_semantics<parallel>], iteration_bounds = array<i64: 3>, scalar_prefetch = 0 : i64, scratch_operands = 0 : i64, tpu.core_type = #tpu.core_type<tc>, window_params = [{transform_indices = @transform_0, window_bounds = array<i64: 32, 128>}, {pipeline_mode = #tpu.pipeline_mode<synchronous>, transform_indices = @transform_1, window_bounds = array<i64: 128, 128>}, {pipeline_mode = #tpu.pipeline_mode<synchronous>, transform_indices = @transform_2, window_bounds = array<i64: 1, 128>}, {pipeline_mode = #tpu.pipeline_mode<synchronous>, transform_indices = @transform_3, window_bounds = array<i64: 128, 128>}, {pipeline_mode = #tpu.pipeline_mode<synchronous>, transform_indices = @transform_4, window_bounds = array<i64: 1, 128>}, {transform_indices = @transform_5, window_bounds = array<i64: 32, 128>}, {transform_indices = @transform_6, window_bounds = array<i64: 1, 1, 128>}]} {
    %c0 = arith.constant 0 : index
    %c0_0 = arith.constant 0 : index
    %0 = vector.load %arg1[%c0, %c0_0] : memref<32x128xf32, #tpu.memory_space<vmem>>, vector<32x128xf32>
    %1 = arith.truncf %0 : vector<32x128xf32> to vector<32x128xbf16>
    %c0_1 = arith.constant 0 : index
    %c0_2 = arith.constant 0 : index
    %2 = vector.load %arg2[%c0_1, %c0_2] : memref<128x128xbf16, #tpu.memory_space<vmem>>, vector<128x128xbf16>
    %cst = arith.constant dense<0.000000e+00> : vector<32x128xf32>
    %3 = tpu.matmul %1, %2, %cst {dimension_numbers = #tpu.dot_dimension_numbers<[1], [0], [0], [1], [0, 0, 1, 1], [], []>} : vector<32x128xbf16>, vector<128x128xbf16>, vector<32x128xf32> -> vector<32x128xf32>
    %c0_3 = arith.constant 0 : index
    %c0_4 = arith.constant 0 : index
    %4 = vector.load %arg3[%c0_3, %c0_4] : memref<1x128xf32, #tpu.memory_space<vmem>>, vector<1x128xf32>
    %5 = vector.broadcast %4 : vector<1x128xf32> to vector<32x128xf32>
    %6 = arith.addf %3, %5 : vector<32x128xf32>
    %cst_5 = arith.constant 5.000000e-01 : f32
    %7 = vector.broadcast %cst_5 : f32 to vector<32x128xf32>
    %8 = arith.mulf %7, %6 : vector<32x128xf32>
    %9 = math.tanh %8 : vector<32x128xf32>
    %cst_6 = arith.constant 1.000000e+00 : f32
    %10 = vector.broadcast %cst_6 : f32 to vector<32x128xf32>
    %11 = arith.addf %9, %10 : vector<32x128xf32>
    %cst_7 = arith.constant 5.000000e-01 : f32
    %12 = vector.broadcast %cst_7 : f32 to vector<32x128xf32>
    %13 = arith.mulf %12, %11 : vector<32x128xf32>
    %c32_i32 = arith.constant 32 : i32
    %14 = arith.muli %arg0, %c32_i32 : i32
    %15 = tpu.iota {dimensions = array<i32: 0>} : vector<32x1xi32>
    %16 = vector.broadcast %14 : i32 to vector<32x1xi32>
    %17 = arith.addi %16, %15 : vector<32x1xi32>
    %c72_i32 = arith.constant 72 : i32
    %18 = vector.broadcast %c72_i32 : i32 to vector<32x1xi32>
    %19 = arith.cmpi slt, %17, %18 : vector<32x1xi32>
    %cst_8 = arith.constant 0.000000e+00 : f32
    %20 = vector.shape_cast %19 : vector<32x1xi1> to vector<32x1xi1>
    %21 = vector.broadcast %20 : vector<32x1xi1> to vector<32x128xi1>
    %22 = vector.broadcast %cst_8 : f32 to vector<32x128xf32>
    %23 = arith.select %21, %13, %22 : vector<32x128xi1>, vector<32x128xf32>
    %cst_9 = arith.constant dense<0.000000e+00> : vector<128xf32>
    %24 = vector.multi_reduction <add>, %23, %cst_9 [0] : vector<32x128xf32> to vector<128xf32>
    %25 = vector.shape_cast %24 : vector<128xf32> to vector<1x128xf32>
    %26 = vector.shape_cast %25 : vector<1x128xf32> to vector<1x1x128xf32>
    %c0_10 = arith.constant 0 : index
    %c0_11 = arith.constant 0 : index
    %c0_12 = arith.constant 0 : index
    %27 = vector.load %arg7[%c0_10, %c0_11, %c0_12] : memref<1x1x128xf32, #tpu.memory_space<vmem>>, vector<1x1x128xf32>
    tpu.vector_store %arg7[%c0_10, %c0_11, %c0_12], %26 {strides = array<i32>} : memref<1x1x128xf32, #tpu.memory_space<vmem>>, vector<1x1x128xf32>,
    %28 = arith.truncf %13 : vector<32x128xf32> to vector<32x128xbf16>
    %c0_13 = arith.constant 0 : index
    %c0_14 = arith.constant 0 : index
    %29 = vector.load %arg4[%c0_13, %c0_14] : memref<128x128xbf16, #tpu.memory_space<vmem>>, vector<128x128xbf16>
    %cst_15 = arith.constant dense<0.000000e+00> : vector<32x128xf32>
    %30 = tpu.matmul %28, %29, %cst_15 {dimension_numbers = #tpu.dot_dimension_numbers<[1], [0], [0], [1], [0, 0, 1, 1], [], []>} : vector<32x128xbf16>, vector<128x128xbf16>, vector<32x128xf32> -> vector<32x128xf32>
    %c0_16 = arith.constant 0 : index
    %c0_17 = arith.constant 0 : index
    %31 = vector.load %arg5[%c0_16, %c0_17] : memref<1x128xf32, #tpu.memory_space<vmem>>, vector<1x128xf32>
    %32 = vector.broadcast %31 : vector<1x128xf32> to vector<32x128xf32>
    %33 = arith.addf %30, %32 : vector<32x128xf32>
    %c0_18 = arith.constant 0 : index
    %c0_19 = arith.constant 0 : index
    %34 = vector.load %arg6[%c0_18, %c0_19] : memref<32x128xf32, #tpu.memory_space<vmem>>, vector<32x128xf32>
    tpu.vector_store %arg6[%c0_18, %c0_19], %33 {strides = array<i32>} : memref<32x128xf32, #tpu.memory_space<vmem>>, vector<32x128xf32>,
    return
  }
  func.func @transform_0(%arg0: i32) -> (i32, i32) {
    %c0_i32 = arith.constant 0 : i32
    %c0_i32_0 = arith.constant 0 : i32
    return %arg0, %c0_i32 : i32, i32
  }
  func.func @transform_1(%arg0: i32) -> (i32, i32) {
    %c0_i32 = arith.constant 0 : i32
    %c0_i32_0 = arith.constant 0 : i32
    %c0_i32_1 = arith.constant 0 : i32
    return %c0_i32, %c0_i32_0 : i32, i32
  }
  func.func @transform_2(%arg0: i32) -> (i32, i32) {
    %c0_i32 = arith.constant 0 : i32
    %c0_i32_0 = arith.constant 0 : i32
    %c0_i32_1 = arith.constant 0 : i32
    return %c0_i32, %c0_i32_0 : i32, i32
  }
  func.func @transform_3(%arg0: i32) -> (i32, i32) {
    %c0_i32 = arith.constant 0 : i32
    %c0_i32_0 = arith.constant 0 : i32
    %c0_i32_1 = arith.constant 0 : i32
    return %c0_i32, %c0_i32_0 : i32, i32
  }
  func.func @transform_4(%arg0: i32) -> (i32, i32) {
    %c0_i32 = arith.constant 0 : i32
    %c0_i32_0 = arith.constant 0 : i32
    %c0_i32_1 = arith.constant 0 : i32
    return %c0_i32, %c0_i32_0 : i32, i32
  }
  func.func @transform_5(%arg0: i32) -> (i32, i32) {
    %c0_i32 = arith.constant 0 : i32
    %c0_i32_0 = arith.constant 0 : i32
    return %arg0, %c0_i32 : i32, i32
  }
  func.func @transform_6(%arg0: i32) -> (i32, i32, i32) {
    %c0_i32 = arith.constant 0 : i32
    %c0_i32_0 = arith.constant 0 : i32
    %c0_i32_1 = arith.constant 0 : i32
    return %arg0, %c0_i32, %c0_i32_0 : i32, i32, i32
  }
}

module attributes {stable_mosaic.version = 11 : i64} {
  func.func @_autoencoder_kernel(%arg0: i32, %arg1: memref<32x128xf32, #tpu.memory_space<vmem>>, %arg2: memref<128x128xbf16, #tpu.memory_space<vmem>>, %arg3: memref<1x128xf32, #tpu.memory_space<vmem>>, %arg4: memref<128x128xbf16, #tpu.memory_space<vmem>>, %arg5: memref<1x128xf32, #tpu.memory_space<vmem>>, %arg6: memref<32x128xf32, #tpu.memory_space<vmem>>, %arg7: memref<1x1x128xf32, #tpu.memory_space<vmem>>) attributes {dimension_semantics = [#tpu.dimension_semantics<parallel>], iteration_bounds = array<i64: 3>, scalar_prefetch = 0 : i64, scratch_operands = 0 : i64, tpu.core_type = #tpu.core_type<tc>, window_params = [{transform_indices = @transform_0, window_bounds = array<i64: 32, 128>}, {pipeline_mode = #tpu.pipeline_mode<synchronous>, transform_indices = @transform_1, window_bounds = array<i64: 128, 128>}, {pipeline_mode = #tpu.pipeline_mode<synchronous>, transform_indices = @transform_2, window_bounds = array<i64: 1, 128>}, {pipeline_mode = #tpu.pipeline_mode<synchronous>, transform_indices = @transform_3, window_bounds = array<i64: 128, 128>}, {pipeline_mode = #tpu.pipeline_mode<synchronous>, transform_indices = @transform_4, window_bounds = array<i64: 1, 128>}, {transform_indices = @transform_5, window_bounds = array<i64: 32, 128>}, {transform_indices = @transform_6, window_bounds = array<i64: 1, 1, 128>}]} {
    %c0 = arith.constant 0 : index
    %c0_0 = arith.constant 0 : index
    %0 = vector.load %arg1[%c0, %c0_0] : memref<32x128xf32, #tpu.memory_space<vmem>>, vector<32x128xf32>
    %1 = arith.truncf %0 : vector<32x128xf32> to vector<32x128xbf16>
    %c0_1 = arith.constant 0 : index
    %c0_2 = arith.constant 0 : index
    %2 = vector.load %arg2[%c0_1, %c0_2] : memref<128x128xbf16, #tpu.memory_space<vmem>>, vector<128x128xbf16>
    %cst = arith.constant dense<0.000000e+00> : vector<32x128xf32>
    %3 = tpu.matmul %1, %2, %cst {dimension_numbers = #tpu.dot_dimension_numbers<[1], [0], [0], [1], [0, 0, 1, 1], [], []>} : vector<32x128xbf16>, vector<128x128xbf16>, vector<32x128xf32> -> vector<32x128xf32>
    %c0_3 = arith.constant 0 : index
    %c0_4 = arith.constant 0 : index
    %4 = vector.load %arg3[%c0_3, %c0_4] : memref<1x128xf32, #tpu.memory_space<vmem>>, vector<1x128xf32>
    %5 = vector.broadcast %4 : vector<1x128xf32> to vector<32x128xf32>
    %6 = arith.addf %3, %5 : vector<32x128xf32>
    %cst_5 = arith.constant 5.000000e-01 : f32
    %7 = vector.broadcast %cst_5 : f32 to vector<32x128xf32>
    %8 = arith.mulf %7, %6 : vector<32x128xf32>
    %9 = math.tanh %8 : vector<32x128xf32>
    %cst_6 = arith.constant 1.000000e+00 : f32
    %10 = vector.broadcast %cst_6 : f32 to vector<32x128xf32>
    %11 = arith.addf %9, %10 : vector<32x128xf32>
    %cst_7 = arith.constant 5.000000e-01 : f32
    %12 = vector.broadcast %cst_7 : f32 to vector<32x128xf32>
    %13 = arith.mulf %12, %11 : vector<32x128xf32>
    %c32_i32 = arith.constant 32 : i32
    %14 = arith.muli %arg0, %c32_i32 : i32
    %15 = tpu.iota {dimensions = array<i32: 0>} : vector<32x1xi32>
    %16 = vector.broadcast %14 : i32 to vector<32x1xi32>
    %17 = arith.addi %16, %15 : vector<32x1xi32>
    %c72_i32 = arith.constant 72 : i32
    %18 = vector.broadcast %c72_i32 : i32 to vector<32x1xi32>
    %19 = arith.cmpi slt, %17, %18 : vector<32x1xi32>
    %cst_8 = arith.constant 0.000000e+00 : f32
    %20 = vector.shape_cast %19 : vector<32x1xi1> to vector<32x1xi1>
    %21 = vector.broadcast %20 : vector<32x1xi1> to vector<32x128xi1>
    %22 = vector.broadcast %cst_8 : f32 to vector<32x128xf32>
    %23 = arith.select %21, %13, %22 : vector<32x128xi1>, vector<32x128xf32>
    %cst_9 = arith.constant dense<0.000000e+00> : vector<128xf32>
    %24 = vector.multi_reduction <add>, %23, %cst_9 [0] : vector<32x128xf32> to vector<128xf32>
    %25 = vector.shape_cast %24 : vector<128xf32> to vector<1x128xf32>
    %26 = vector.shape_cast %25 : vector<1x128xf32> to vector<1x1x128xf32>
    %c0_10 = arith.constant 0 : index
    %c0_11 = arith.constant 0 : index
    %c0_12 = arith.constant 0 : index
    %27 = vector.load %arg7[%c0_10, %c0_11, %c0_12] : memref<1x1x128xf32, #tpu.memory_space<vmem>>, vector<1x1x128xf32>
    tpu.vector_store %arg7[%c0_10, %c0_11, %c0_12], %26 {strides = array<i32>} : memref<1x1x128xf32, #tpu.memory_space<vmem>>, vector<1x1x128xf32>,
    %28 = arith.truncf %13 : vector<32x128xf32> to vector<32x128xbf16>
    %c0_13 = arith.constant 0 : index
    %c0_14 = arith.constant 0 : index
    %29 = vector.load %arg4[%c0_13, %c0_14] : memref<128x128xbf16, #tpu.memory_space<vmem>>, vector<128x128xbf16>
    %cst_15 = arith.constant dense<0.000000e+00> : vector<32x128xf32>
    %30 = tpu.matmul %28, %29, %cst_15 {dimension_numbers = #tpu.dot_dimension_numbers<[1], [0], [0], [1], [0, 0, 1, 1], [], []>} : vector<32x128xbf16>, vector<128x128xbf16>, vector<32x128xf32> -> vector<32x128xf32>
    %c0_16 = arith.constant 0 : index
    %c0_17 = arith.constant 0 : index
    %31 = vector.load %arg5[%c0_16, %c0_17] : memref<1x128xf32, #tpu.memory_space<vmem>>, vector<1x128xf32>
    %32 = vector.broadcast %31 : vector<1x128xf32> to vector<32x128xf32>
    %33 = arith.addf %30, %32 : vector<32x128xf32>
    %c0_18 = arith.constant 0 : index
    %c0_19 = arith.constant 0 : index
    %34 = vector.load %arg6[%c0_18, %c0_19] : memref<32x128xf32, #tpu.memory_space<vmem>>, vector<32x128xf32>
    tpu.vector_store %arg6[%c0_18, %c0_19], %33 {strides = array<i32>} : memref<32x128xf32, #tpu.memory_space<vmem>>, vector<32x128xf32>,
    return
  }
  func.func @transform_0(%arg0: i32) -> (i32, i32) {
    %c0_i32 = arith.constant 0 : i32
    %c0_i32_0 = arith.constant 0 : i32
    return %arg0, %c0_i32 : i32, i32
  }
  func.func @transform_1(%arg0: i32) -> (i32, i32) {
    %c0_i32 = arith.constant 0 : i32
    %c0_i32_0 = arith.constant 0 : i32
    %c0_i32_1 = arith.constant 0 : i32
    return %c0_i32, %c0_i32_0 : i32, i32
  }
  func.func @transform_2(%arg0: i32) -> (i32, i32) {
    %c0_i32 = arith.constant 0 : i32
    %c0_i32_0 = arith.constant 0 : i32
    %c0_i32_1 = arith.constant 0 : i32
    return %c0_i32, %c0_i32_0 : i32, i32
  }
  func.func @transform_3(%arg0: i32) -> (i32, i32) {
    %c0_i32 = arith.constant 0 : i32
    %c0_i32_0 = arith.constant 0 : i32
    %c0_i32_1 = arith.constant 0 : i32
    return %c0_i32, %c0_i32_0 : i32, i32
  }
  func.func @transform_4(%arg0: i32) -> (i32, i32) {
    %c0_i32 = arith.constant 0 : i32
    %c0_i32_0 = arith.constant 0 : i32
    %c0_i32_1 = arith.constant 0 : i32
    return %c0_i32, %c0_i32_0 : i32, i32
  }
  func.func @transform_5(%arg0: i32) -> (i32, i32) {
    %c0_i32 = arith.constant 0 : i32
    %c0_i32_0 = arith.constant 0 : i32
    return %arg0, %c0_i32 : i32, i32
  }
  func.func @transform_6(%arg0: i32) -> (i32, i32, i32) {
    %c0_i32 = arith.constant 0 : i32
    %c0_i32_0 = arith.constant 0 : i32
    %c0_i32_1 = arith.constant 0 : i32
    return %arg0, %c0_i32, %c0_i32_0 : i32, i32, i32
  }
}

</mosaic_0001>

<llo_original>
// kernel: tpu_custom_call.1
$region0: #{tpu_custom_call.1}
  #allocation0 [shape = 'u32[]', space=smem, size = 0x4, offset = 0x4, fixed_abs, tag = 'smem constant byte address 0x4 - core index']
  #allocation1 [shape = 'u32[144,128]{1,0:T(1,128)}', space=vmem, size = 0x12000, scoped, tag = 'internal scratch']
  %s0 = inlined_call_operand.hbm [shape: f32[72,128], index: 0, kind: input, shape index: {}]
  %s1 = inlined_call_operand.hbm [shape: bf16[128,128], index: 1, kind: input, shape index: {}]
  %s2 = inlined_call_operand.vmem [shape: f32[1,128], index: 2, kind: input, shape index: {}]
  %s3 = inlined_call_operand.hbm [shape: bf16[128,128], index: 3, kind: input, shape index: {}]
  %s4 = inlined_call_operand.vmem [shape: f32[1,128], index: 4, kind: input, shape index: {}]
  %s5 = inlined_call_operand.hbm [shape: f32[72,128], index: 5, kind: output, shape index: {0}]
  %s6 = inlined_call_operand.hbm [shape: f32[3,1,128], index: 6, kind: output, shape index: {1}]
  %7 = xla_tuple %s5, %s6
  %s8 = sld [smem:[#allocation0]]
  $region73: #{tpu_custom_call.1} parent=0
    _
  %s10 = ssub.s32 1, %s8
  %s11 = scalar_select 0, %s10, %s8
  $region1: #{tpu_custom_call.1} parent=0
    #allocation2 [shape = 'u8[32768]{0}', space=vmem, size = 0x8000, scoped, tag = 'input window, operand 0']
    #allocation3 [shape = 's32[2]{0}', space=sflag, size = 0x8, scoped, tag = 'scoped memory for tpu_custom_call.1']
    #allocation4 [shape = 's32[2]{0}', space=sflag, size = 0x8, scoped, tag = 'scoped memory for tpu_custom_call.1']
    #allocation5 [shape = 'u8[32768]{0}', space=vmem, size = 0x8000, scoped, tag = 'input window, operand 1, single buffered']
    #allocation6 [shape = 's32[1]{0}', space=sflag, size = 0x4, scoped, tag = 'scoped memory for tpu_custom_call.1']
    #allocation7 [shape = 'u8[32768]{0}', space=vmem, size = 0x8000, scoped, tag = 'input window, operand 3, single buffered']
    #allocation8 [shape = 'u8[32768]{0}', space=vmem, size = 0x8000, scoped, tag = 'output window, operand 0']
    #allocation9 [shape = 'u8[1024]{0}', space=vmem, size = 0x400, scoped, tag = 'output window, operand 1']
    #allocation10 [shape = 's32[2]{0}', space=sflag, size = 0x8, scoped, tag = 'scoped memory for tpu_custom_call.1']
    %12 = vsyncpa [#allocation3], 0
    %s13 = scalar_lea.sflag [#allocation3], 1
    %14 = vsyncpa %s13, 0
    %15 = vsyncpa [#allocation6], 0
    %16 = vsyncpa [#allocation4], 0
    %s17 = scalar_lea.sflag [#allocation4], 1
    %18 = vsyncpa %s17, 0
    %19 = vsyncpa [#allocation10], 0
    %s20 = scalar_lea.sflag [#allocation10], 1
    %21 = vsyncpa %s20, 0
    loop: start=0, step=1, limit=5
    $region2: #{tpu_custom_call.1} parent=1 // loop_pre_header
      _
    $region3: #{tpu_custom_call.1} parent=1 // loop_header
      %s23 = sphi 0, %s27
      %p24 = scmp.ge.s32.totalorder %s23, 5
      %s33 = sphi 0, %s35
      %s36 = sphi 0, %s33
      %s37 = sphi 0, %s36
      %s53 = sphi 0, %s37
      %s57 = sphi 0, %s57
      %s59 = sphi 0, %s57
      %s60 = sphi 0, %s59
      %s74 = sphi 0, %s60
      %s78 = sphi 0, %s78
      %s80 = sphi 0, %s78
      %s81 = sphi 0, %s80
      %s95 = sphi 0, %s81
      %s99 = sphi 0, %s99
      %s101 = sphi 0, %s99
      %s102 = sphi 0, %s101
      %s116 = sphi 0, %s102
      %s120 = sphi 0, %s120
      %s122 = sphi 0, %s120
      %s123 = sphi 0, %s122
      %s137 = sphi 0, %s123
      %s143 = sphi 0, %s145
      %s146 = sphi 0, %s143
      %s147 = sphi 0, %s146
      %s163 = sphi 0, %s147
      %s169 = sphi 0, %s171
      %s172 = sphi 0, %s169
      %s173 = sphi 0, %s172
      %s189 = sphi 0, %s173
    $region4: #{tpu_custom_call.1} parent=1 // loop_header_branch
      %26 = sbr.rel (%p24) target = $region8
    $region5: #{tpu_custom_call.1} parent=1 // loop_body
      %s28 = ssub.s32 %s23, 1
      %s29 = ssub.s32 %s23, 2
      %s30 = sadd.s32 %s23, 1
      %s31 = ssub.s32 %s23, %s30
      %p32 = scmp.eq.s32.totalorder %s31, 0
      %s34 = sadd.s32 %s33, 1
      %s35 = scalar_select %p32, %s33, %s34
      %p38 = pneg %p32
      %p39 = scmp.eq.s32.totalorder %s23, 2
      %p40 = por %p38, %p39
      %p41 = scmp.ne.s32.totalorder %s33, %s36
      %p42 = scmp.eq.s32.totalorder %s23, 0
      %p43 = por %p41, %p42
      %p44 = scmp.ne.s32.totalorder %s33, %s36
      %p45 = scmp.eq.s32.totalorder %s28, 2
      %p46 = por %p44, %p45
      %p47 = scmp.ne.s32.totalorder %s36, %s37
      %p48 = scmp.eq.s32.totalorder %s28, 0
      %p49 = por %p47, %p48
      %p50 = scmp.ne.s32.totalorder %s36, %s37
      %p51 = scmp.eq.s32.totalorder %s29, 2
      %p52 = por %p50, %p51
      %p54 = scmp.ne.s32.totalorder %s37, %s53
      %p55 = scmp.eq.s32.totalorder %s29, 0
      %p56 = por %p54, %p55
      %s58 = sadd.s32 %s57, 1
      %p61 = scmp.eq.s32.totalorder %s23, 2
      %p62 = scmp.ne.s32.totalorder %s57, %s59
      %p63 = scmp.eq.s32.totalorder %s23, 0
      %p64 = por %p62, %p63
      %p65 = scmp.ne.s32.totalorder %s57, %s59
      %p66 = scmp.eq.s32.totalorder %s28, 2
      %p67 = por %p65, %p66
      %p68 = scmp.ne.s32.totalorder %s59, %s60
      %p69 = scmp.eq.s32.totalorder %s28, 0
      %p70 = por %p68, %p69
      %p71 = scmp.ne.s32.totalorder %s59, %s60
      %p72 = scmp.eq.s32.totalorder %s29, 2
      %p73 = por %p71, %p72
      %p75 = scmp.ne.s32.totalorder %s60, %s74
      %p76 = scmp.eq.s32.totalorder %s29, 0
      %p77 = por %p75, %p76
      %s79 = sadd.s32 %s78, 1
      %p82 = scmp.eq.s32.totalorder %s23, 2
      %p83 = scmp.ne.s32.totalorder %s78, %s80
      %p84 = scmp.eq.s32.totalorder %s23, 0
      %p85 = por %p83, %p84
      %p86 = scmp.ne.s32.totalorder %s78, %s80
      %p87 = scmp.eq.s32.totalorder %s28, 2
      %p88 = por %p86, %p87
      %p89 = scmp.ne.s32.totalorder %s80, %s81
      %p90 = scmp.eq.s32.totalorder %s28, 0
      %p91 = por %p89, %p90
      %p92 = scmp.ne.s32.totalorder %s80, %s81
      %p93 = scmp.eq.s32.totalorder %s29, 2
      %p94 = por %p92, %p93
      %p96 = scmp.ne.s32.totalorder %s81, %s95
      %p97 = scmp.eq.s32.totalorder %s29, 0
      %p98 = por %p96, %p97
      %s100 = sadd.s32 %s99, 1
      %p103 = scmp.eq.s32.totalorder %s23, 2
      %p104 = scmp.ne.s32.totalorder %s99, %s101
      %p105 = scmp.eq.s32.totalorder %s23, 0
      %p106 = por %p104, %p105
      %p107 = scmp.ne.s32.totalorder %s99, %s101
      %p108 = scmp.eq.s32.totalorder %s28, 2
      %p109 = por %p107, %p108
      %p110 = scmp.ne.s32.totalorder %s101, %s102
      %p111 = scmp.eq.s32.totalorder %s28, 0
      %p112 = por %p110, %p111
      %p113 = scmp.ne.s32.totalorder %s101, %s102
      %p114 = scmp.eq.s32.totalorder %s29, 2
      %p115 = por %p113, %p114
      %p117 = scmp.ne.s32.totalorder %s102, %s116
      %p118 = scmp.eq.s32.totalorder %s29, 0
      %p119 = por %p117, %p118
      %s121 = sadd.s32 %s120, 1
      %p124 = scmp.eq.s32.totalorder %s23, 2
      %p125 = scmp.ne.s32.totalorder %s120, %s122
      %p126 = scmp.eq.s32.totalorder %s23, 0
      %p127 = por %p125, %p126
      %p128 = scmp.ne.s32.totalorder %s120, %s122
      %p129 = scmp.eq.s32.totalorder %s28, 2
      %p130 = por %p128, %p129
      %p131 = scmp.ne.s32.totalorder %s122, %s123
      %p132 = scmp.eq.s32.totalorder %s28, 0
      %p133 = por %p131, %p132
      %p134 = scmp.ne.s32.totalorder %s122, %s123
      %p135 = scmp.eq.s32.totalorder %s29, 2
      %p136 = por %p134, %p135
      %p138 = scmp.ne.s32.totalorder %s123, %s137
      %p139 = scmp.eq.s32.totalorder %s29, 0
      %p140 = por %p138, %p139
      %s141 = ssub.s32 %s23, %s30
      %p142 = scmp.eq.s32.totalorder %s141, 0
      %s144 = sadd.s32 %s143, 1
      %s145 = scalar_select %p142, %s143, %s144
      %p148 = pneg %p142
      %p149 = scmp.eq.s32.totalorder %s23, 2
      %p150 = por %p148, %p149
      %p151 = scmp.ne.s32.totalorder %s143, %s146
      %p152 = scmp.eq.s32.totalorder %s23, 0
      %p153 = por %p151, %p152
      %p154 = scmp.ne.s32.totalorder %s143, %s146
      %p155 = scmp.eq.s32.totalorder %s28, 2
      %p156 = por %p154, %p155
      %p157 = scmp.ne.s32.totalorder %s146, %s147
      %p158 = scmp.eq.s32.totalorder %s28, 0
      %p159 = por %p157, %p158
      %p160 = scmp.ne.s32.totalorder %s146, %s147
      %p161 = scmp.eq.s32.totalorder %s29, 2
      %p162 = por %p160, %p161
      %p164 = scmp.ne.s32.totalorder %s147, %s163
      %p165 = scmp.eq.s32.totalorder %s29, 0
      %p166 = por %p164, %p165
      %s167 = ssub.s32 %s23, %s30
      %p168 = scmp.eq.s32.totalorder %s167, 0
      %s170 = sadd.s32 %s169, 1
      %s171 = scalar_select %p168, %s169, %s170
      %p174 = pneg %p168
      %p175 = scmp.eq.s32.totalorder %s23, 2
      %p176 = por %p174, %p175
      %p177 = scmp.ne.s32.totalorder %s169, %s172
      %p178 = scmp.eq.s32.totalorder %s23, 0
      %p179 = por %p177, %p178
      %p180 = scmp.ne.s32.totalorder %s169, %s172
      %p181 = scmp.eq.s32.totalorder %s28, 2
      %p182 = por %p180, %p181
      %p183 = scmp.ne.s32.totalorder %s172, %s173
      %p184 = scmp.eq.s32.totalorder %s28, 0
      %p185 = por %p183, %p184
      %p186 = scmp.ne.s32.totalorder %s172, %s173
      %p187 = scmp.eq.s32.totalorder %s29, 2
      %p188 = por %p186, %p187
      %p190 = scmp.ne.s32.totalorder %s173, %s189
      %p191 = scmp.eq.s32.totalorder %s29, 0
      %p192 = por %p190, %p191
      %p193 = scmp.le.s32.totalorder 1, %s23
      %p194 = scmp.lt.s32.totalorder %s23, 4
      %p195 = pnand %p193, %p194
      %p196 = pneg %p195
      // Predicated region
      $region9: #{tpu_custom_call.1} parent=5 // pred_check
        _
      $region10: #{tpu_custom_call.1} parent=5 // pred_check_branch
        %198 = sbr.rel (%p195) target = $region12
      $region11: #{tpu_custom_call.1} parent=5 // pred_region
        %s199 = ssub.s32 %s23, 1
        // Predicated region
        $region13: #{tpu_custom_call.1} parent=11 // pred_check
          %p200 = pneg %p70
        $region14: #{tpu_custom_call.1} parent=11 // pred_check_branch
          %202 = sbr.rel (%p200) target = $region16
        $region15: #{tpu_custom_call.1} parent=11 // pred_region
          %s204 = ssub.s32 1024, 1024
          %205 = vsyncadd [#allocation6], %s204
          %s206 = sshll.u32 [#allocation5], 4
          %s207 = int_to_ptr.vmem [resolvable:$true] %s206
          %212 = dma.hbm_to_vmem [thread:$0]  %s1, 1024, %s207, [#allocation6], 64, 64, 4
        $region16: #{tpu_custom_call.1} parent=11 // pred_fallthru
          _
        // Predicated region
        $region17: #{tpu_custom_call.1} parent=11 // pred_check
          %p213 = pneg %p91
        $region18: #{tpu_custom_call.1} parent=11 // pred_check_branch
          %215 = sbr.rel (%p213) target = $region20
        $region19: #{tpu_custom_call.1} parent=11 // pred_region
          _
        $region20: #{tpu_custom_call.1} parent=11 // pred_fallthru
          _
        // Predicated region
        $region21: #{tpu_custom_call.1} parent=11 // pred_check
          %p216 = pneg %p112
        $region22: #{tpu_custom_call.1} parent=11 // pred_check_branch
          %218 = sbr.rel (%p216) target = $region24
        $region23: #{tpu_custom_call.1} parent=11 // pred_region
          %s220 = ssub.s32 1024, 1024
          %221 = vsyncadd [#allocation6], %s220
          %s222 = sshll.u32 [#allocation7], 4
          %s223 = int_to_ptr.vmem [resolvable:$true] %s222
          %228 = dma.hbm_to_vmem [thread:$0]  %s3, 1024, %s223, [#allocation6], 64, 64, 4
        $region24: #{tpu_custom_call.1} parent=11 // pred_fallthru
          _
        // Predicated region
        $region25: #{tpu_custom_call.1} parent=11 // pred_check
          %p229 = pneg %p133
        $region26: #{tpu_custom_call.1} parent=11 // pred_check_branch
          %231 = sbr.rel (%p229) target = $region28
        $region27: #{tpu_custom_call.1} parent=11 // pred_region
          _
        $region28: #{tpu_custom_call.1} parent=11 // pred_fallthru
          _
      $region12: #{tpu_custom_call.1} parent=5 // pred_fallthru
        _
      %p232 = scmp.lt.s32.totalorder %s23, 3
      // Predicated region
      $region29: #{tpu_custom_call.1} parent=5 // pred_check
        %p233 = pneg %p232
      $region30: #{tpu_custom_call.1} parent=5 // pred_check_branch
        %235 = sbr.rel (%p233) target = $region32
      $region31: #{tpu_custom_call.1} parent=5 // pred_region
        // Predicated region
        $region33: #{tpu_custom_call.1} parent=31 // pred_check
          %p236 = pneg %p43
        $region34: #{tpu_custom_call.1} parent=31 // pred_check_branch
          %238 = sbr.rel (%p236) target = $region36
        $region35: #{tpu_custom_call.1} parent=31 // pred_region
          %s239 = sand.u32 %s33, 1
          %s240 = scalar_lea.sflag [#allocation3], %s239
          %s241 = sand.u32 %s33, 1
          %s242 = smul.addr %s241, 32
          %s243 = scalar_lea.vmem [#allocation2], %s242
          %s244 = smul.u32 4, %s23
          %s245 = ssub.s32 9, %s244
          %p246 = scmp.lt.s32.totalorder %s245, 4
          %s247 = scalar_select %p246, %s245, 4
          %s248 = smul.u32 128, %s247
          %s250 = ssub.s32 512, %s248
          %251 = vsyncadd %s240, %s250
          %p252 = scmp.ne.s32.totalorder 0, %s248
          %s253 = smul.addr %s244, 128
          %s254 = scalar_lea.hbm %s0, %s253
          %s255 = smul.u32 8, %s247
          %s256 = sshll.u32 %s243, 4
          %s257 = int_to_ptr.vmem [resolvable:$true] %s256
          %s258 = sshll.u32 %s255, 4
          %262 = dma.hbm_to_vmem [thread:$0]  (%p252), %s254, %s258, %s257, %s240, 128, 128, 8
        $region36: #{tpu_custom_call.1} parent=31 // pred_fallthru
          _
      $region32: #{tpu_custom_call.1} parent=5 // pred_fallthru
        _
      %p263 = scmp.le.s32.totalorder 1, %s23
      %p264 = scmp.lt.s32.totalorder %s23, 4
      %p265 = pnand %p263, %p264
      %p266 = pneg %p265
      // Predicated region
      $region37: #{tpu_custom_call.1} parent=5 // pred_check
        _
      $region38: #{tpu_custom_call.1} parent=5 // pred_check_branch
        %268 = sbr.rel (%p265) target = $region40
      $region39: #{tpu_custom_call.1} parent=5 // pred_region
        %s269 = ssub.s32 %s23, 1
        %s270 = sand.u32 %s36, 1
        %s271 = scalar_lea.sflag [#allocation3], %s270
        %s272 = sand.u32 %s36, 1
        %s273 = smul.addr %s272, 32
        %s274 = scalar_lea.vmem [#allocation2], %s273
        // Predicated region
        $region41: #{tpu_custom_call.1} parent=39 // pred_check
          %p275 = pneg %p49
        $region42: #{tpu_custom_call.1} parent=39 // pred_check_branch
          %277 = sbr.rel (%p275) target = $region44
        $region43: #{tpu_custom_call.1} parent=39 // pred_region
          %278 = dma.done %s271, 512
        $region44: #{tpu_custom_call.1} parent=39 // pred_fallthru
          _
        // Predicated region
        $region45: #{tpu_custom_call.1} parent=39 // pred_check
          %p279 = pneg %p70
        $region46: #{tpu_custom_call.1} parent=39 // pred_check_branch
          %281 = sbr.rel (%p279) target = $region48
        $region47: #{tpu_custom_call.1} parent=39 // pred_region
          %282 = dma.done [#allocation6], 1024
        $region48: #{tpu_custom_call.1} parent=39 // pred_fallthru
          _
        // Predicated region
        $region49: #{tpu_custom_call.1} parent=39 // pred_check
          %p283 = pneg %p112
        $region50: #{tpu_custom_call.1} parent=39 // pred_check_branch
          %285 = sbr.rel (%p283) target = $region52
        $region51: #{tpu_custom_call.1} parent=39 // pred_region
          %286 = dma.done [#allocation6], 1024
        $region52: #{tpu_custom_call.1} parent=39 // pred_fallthru
          _
        %s287 = sand.u32 %s36, 1
        %s288 = scalar_lea.sflag [#allocation3], %s287
        %s289 = sand.u32 %s36, 1
        %s290 = smul.addr %s289, 32
        %s291 = scalar_lea.vmem [#allocation2], %s290
        %p292 = pneg %p49
        %p293 = pneg %p46
        %p294 = pneg %p70
        %p295 = pneg %p67
        %p296 = pneg %p91
        %p297 = pneg %p88
        %p298 = pneg %p112
        %p299 = pneg %p109
        %p300 = pneg %p133
        %p301 = pneg %p130
        %p302 = pneg %p159
        %p303 = pneg %p156
        %s304 = sand.u32 %s146, 1
        %s305 = scalar_lea.sflag [#allocation4], %s304
        %s306 = sand.u32 %s146, 1
        %s307 = smul.addr %s306, 32
        %s308 = scalar_lea.vmem [#allocation8], %s307
        %p309 = pneg %p185
        %p310 = pneg %p182
        %s311 = sand.u32 %s172, 1
        %s312 = scalar_lea.sflag [#allocation10], %s311
        %s313 = sand.u32 %s172, 1
        %s314 = scalar_lea.vmem [#allocation9], %s313
        %s315 = smul.u32 4, %s28
        %s316 = ssub.s32 9, %s315
        %p317 = scmp.lt.s32.totalorder %s316, 4
        %s318 = scalar_select %p317, %s316, 4
        %s319 = smul.u32 128, %s318
        %s320 = smul.u32 4, %s28
        %s321 = ssub.s32 9, %s320
        %p322 = scmp.lt.s32.totalorder %s321, 4
        %s323 = scalar_select %p322, %s321, 4
        %s324 = smul.u32 128, %s323
        %v326 = vld [vmem:[%s274] sm:$0xff]
        %v327 = vld [vmem:[%s274 + $0x8] sm:$0xff]
        %v328 = vld [vmem:[%s274 + $0x10] sm:$0xff]
        %v329 = vld [vmem:[%s274 + $0x18] sm:$0xff]
        %v330 = vpack.c.bf16 %v327, %v326
        %v331 = vpack.c.bf16 %v329, %v328
        %v332 = vld [vmem:[#allocation5] sm:$0xf]
        %v333 = vld [vmem:[#allocation5 + $0x4] sm:$0xf]
        %v334 = vld [vmem:[#allocation5 + $0x8] sm:$0xf]
        %v335 = vld [vmem:[#allocation5 + $0xc] sm:$0xf]
        %v336 = vld [vmem:[#allocation5 + $0x10] sm:$0xf]
        %v337 = vld [vmem:[#allocation5 + $0x14] sm:$0xf]
        %v338 = vld [vmem:[#allocation5 + $0x18] sm:$0xf]
        %v339 = vld [vmem:[#allocation5 + $0x1c] sm:$0xf]
        %v340 = vld [vmem:[#allocation5 + $0x20] sm:$0xf]
        %v341 = vld [vmem:[#allocation5 + $0x24] sm:$0xf]
        %v342 = vld [vmem:[#allocation5 + $0x28] sm:$0xf]
        %v343 = vld [vmem:[#allocation5 + $0x2c] sm:$0xf]
        %v344 = vld [vmem:[#allocation5 + $0x30] sm:$0xf]
        %v345 = vld [vmem:[#allocation5 + $0x34] sm:$0xf]
        %v346 = vld [vmem:[#allocation5 + $0x38] sm:$0xf]
        %v347 = vld [vmem:[#allocation5 + $0x3c] sm:$0xf]
        %v348 = vld [vmem:[%s2] sm:$0x1]
        %v350 = vlaneseq
        %v351 = vshrl.u32 %v350, 7
        %v352 = vsub.s32 0, %v351
        %v353 = vrot.slane %v348, %v352
        %v371 = vunpack.c.l.b16 %v332
        %v372 = vunpack.c.l.b16 %v333
        %v373 = vunpack.c.l.b16 %v334
        %v374 = vunpack.c.l.b16 %v335
        %v375 = vunpack.c.l.b16 %v336
        %v376 = vunpack.c.l.b16 %v337
        %v377 = vunpack.c.l.b16 %v338
        %v378 = vunpack.c.l.b16 %v339
        %v379 = vunpack.c.l.b16 %v340
        %v380 = vunpack.c.l.b16 %v341
        %v381 = vunpack.c.l.b16 %v342
        %v382 = vunpack.c.l.b16 %v343
        %v383 = vunpack.c.l.b16 %v344
        %v384 = vunpack.c.l.b16 %v345
        %v385 = vunpack.c.l.b16 %v346
        %v386 = vunpack.c.l.b16 %v347
        %v387 = vpack.c.b16 %v372, %v371
        %v388 = vpack.c.b16 %v374, %v373
        %v389 = vpack.c.b16 %v376, %v375
        %v390 = vpack.c.b16 %v378, %v377
        %v391 = vpack.c.b16 %v380, %v379
        %v392 = vpack.c.b16 %v382, %v381
        %v393 = vpack.c.b16 %v384, %v383
        %v394 = vpack.c.b16 %v386, %v385
        %403 = vmatprep.subr.bf16.mxu0 0
        %404 = vmatpush1.bf16.msra.mxu0 %v394
        %405 = vmatprep.subr.bf16.mxu0 0
        %406 = vmatpush1.bf16.msra.mxu0 %v393
        %407 = vmatprep.subr.bf16.mxu0 0
        %408 = vmatpush1.bf16.msra.mxu0 %v392
        %409 = vmatprep.subr.bf16.mxu0 0
        %410 = vmatpush1.bf16.msra.mxu0 %v391
        %411 = vmatprep.subr.bf16.mxu0 0
        %412 = vmatpush1.bf16.msra.mxu0 %v390
        %413 = vmatprep.subr.bf16.mxu0 0
        %414 = vmatpush1.bf16.msra.mxu0 %v389
        %415 = vmatprep.subr.bf16.mxu0 0
        %416 = vmatpush1.bf16.msra.mxu0 %v388
        %417 = vmatprep.subr.bf16.mxu0 0
        %418 = vmatpush1.bf16.msra.mxu0 %v387
        %419 = vmatprep.subr.bf16.mxu0 0
        %420 = vmatpush2.bf16.msra.mxu0 0
        %421 = vmatprep.subr.bf16.mxu0 0
        %422 = vmatpush2.bf16.msra.mxu0 0
        %423 = vmatprep.subr.bf16.mxu0 0
        %424 = vmatpush2.bf16.msra.mxu0 0
        %425 = vmatprep.subr.bf16.mxu0 0
        %426 = vmatpush2.bf16.msra.mxu0 0
        %427 = vmatprep.subr.bf16.mxu0 0
        %428 = vmatpush2.bf16.msra.mxu0 0
        %429 = vmatprep.subr.bf16.mxu0 0
        %430 = vmatpush2.bf16.msra.mxu0 0
        %431 = vmatprep.subr.bf16.mxu0 0
        %432 = vmatpush2.bf16.msra.mxu0 0
        %433 = vmatprep.subr.bf16.mxu0 0
        %434 = vmatpush2.bf16.msra.mxu0 0
        %435 = vmatprep.mubr.bf16.mxu0 0
        %436 = vmatmul.mubr.bf16.gmra.mxu0 %v330
        %v437 = vpop.f32.mrf.mxu0
        %v438 = vadd.f32 %v353, %v437
        %v439 = vpop.f32.mrf.mxu0
        %v440 = vpop.f32.mrf.mxu0
        %v441 = vadd.f32 %v353, %v440
        %v442 = vpop.f32.mrf.mxu0
        %443 = vmatprep.mubr.bf16.mxu0 0
        %444 = vmatmul.mubr.bf16.gmra.mxu0 %v331
        %v445 = vpop.f32.mrf.mxu0
        %v446 = vadd.f32 %v353, %v445
        %v447 = vpop.f32.mrf.mxu0
        %v448 = vpop.f32.mrf.mxu0
        %v449 = vadd.f32 %v353, %v448
        %v450 = vpop.f32.mrf.mxu0
        %451 = vdwg.mxu0
        %v452 = vmul.f32 %v438, 0.5
        %v453 = vmul.f32 %v441, 0.5
        %v454 = vmul.f32 %v446, 0.5
        %v455 = vmul.f32 %v449, 0.5
        %v456 = vtanh.pop %v452
        %v457 = vtanh.pop %v453
        %v458 = vtanh.pop %v454
        %v459 = vtanh.pop %v455
        %v460 = vadd.f32 %v456, 1.0
        %v461 = vadd.f32 %v457, 1.0
        %v462 = vadd.f32 %v458, 1.0
        %v463 = vadd.f32 %v459, 1.0
        %v464 = vmul.f32 %v460, 0.5
        %v465 = vmul.f32 %v461, 0.5
        %v466 = vmul.f32 %v462, 0.5
        %v467 = vmul.f32 %v463, 0.5
        %s468 = smul.u32 %s28, 32
        %v469 = vlaneseq
        %v470 = vshrl.u32 %v469, 7
        %v471 = vadd.s32 %v470, 8
        %v472 = vadd.s32 %v470, 16
        %v473 = vadd.s32 %v470, 24
        %v474 = vstv %s468
        %v475 = vadd.s32 %v474, %v470
        %v476 = vadd.s32 %v474, %v471
        %v477 = vadd.s32 %v474, %v472
        %v478 = vadd.s32 %v474, %v473
        %vm479 = vcmp.lt.s32.totalorder %v475, 72
        %vm480 = vcmp.lt.s32.totalorder %v476, 72
        %vm481 = vcmp.lt.s32.totalorder %v477, 72
        %vm482 = vcmp.lt.s32.totalorder %v478, 72
        %v483 = vsel %vm479, 1, 0
        %v484 = vsel %vm480, 1, 0
        %v485 = vsel %vm481, 1, 0
        %v486 = vsel %vm482, 1, 0
        %vm487 = vcmp.eq.s32.totalorder %v483, 1
        %vm488 = vcmp.eq.s32.totalorder %v484, 1
        %vm489 = vcmp.eq.s32.totalorder %v485, 1
        %vm490 = vcmp.eq.s32.totalorder %v486, 1
        %v491 = vsel %vm487, %v464, 0.0
        %v492 = vsel %vm488, %v465, 0.0
        %v493 = vsel %vm489, %v466, 0.0
        %v494 = vsel %vm490, %v467, 0.0
        %v495 = vadd.f32 %v491, %v492
        %v496 = vadd.f32 %v495, %v493
        %v497 = vadd.f32 %v496, %v494
        %v498 = vrot.slane %v497, 4
        %v499 = vadd.f32 %v497, %v498
        %v500 = vrot.slane %v499, 2
        %v501 = vadd.f32 %v499, %v500
        %v502 = vrot.slane %v501, 1
        %v503 = vadd.f32 %v501, %v502
        %504 = vst [vmem:[%s314] sm:$0x1] %v503
        %v505 = vpack.c.bf16 %v465, %v464
        %v506 = vpack.c.bf16 %v467, %v466
        %v507 = vld [vmem:[#allocation7] sm:$0xf]
        %v508 = vld [vmem:[#allocation7 + $0x4] sm:$0xf]
        %v509 = vld [vmem:[#allocation7 + $0x8] sm:$0xf]
        %v510 = vld [vmem:[#allocation7 + $0xc] sm:$0xf]
        %v511 = vld [vmem:[#allocation7 + $0x10] sm:$0xf]
        %v512 = vld [vmem:[#allocation7 + $0x14] sm:$0xf]
        %v513 = vld [vmem:[#allocation7 + $0x18] sm:$0xf]
        %v514 = vld [vmem:[#allocation7 + $0x1c] sm:$0xf]
        %v515 = vld [vmem:[#allocation7 + $0x20] sm:$0xf]
        %v516 = vld [vmem:[#allocation7 + $0x24] sm:$0xf]
        %v517 = vld [vmem:[#allocation7 + $0x28] sm:$0xf]
        %v518 = vld [vmem:[#allocation7 + $0x2c] sm:$0xf]
        %v519 = vld [vmem:[#allocation7 + $0x30] sm:$0xf]
        %v520 = vld [vmem:[#allocation7 + $0x34] sm:$0xf]
        %v521 = vld [vmem:[#allocation7 + $0x38] sm:$0xf]
        %v522 = vld [vmem:[#allocation7 + $0x3c] sm:$0xf]
        %v523 = vld [vmem:[%s4] sm:$0x1]
        %v525 = vlaneseq
        %v526 = vshrl.u32 %v525, 7
        %v527 = vsub.s32 0, %v526
        %v528 = vrot.slane %v523, %v527
        %v546 = vunpack.c.l.b16 %v507
        %v547 = vunpack.c.l.b16 %v508
        %v548 = vunpack.c.l.b16 %v509
        %v549 = vunpack.c.l.b16 %v510
        %v550 = vunpack.c.l.b16 %v511
        %v551 = vunpack.c.l.b16 %v512
        %v552 = vunpack.c.l.b16 %v513
        %v553 = vunpack.c.l.b16 %v514
        %v554 = vunpack.c.l.b16 %v515
        %v555 = vunpack.c.l.b16 %v516
        %v556 = vunpack.c.l.b16 %v517
        %v557 = vunpack.c.l.b16 %v518
        %v558 = vunpack.c.l.b16 %v519
        %v559 = vunpack.c.l.b16 %v520
        %v560 = vunpack.c.l.b16 %v521
        %v561 = vunpack.c.l.b16 %v522
        %v562 = vpack.c.b16 %v547, %v546
        %v563 = vpack.c.b16 %v549, %v548
        %v564 = vpack.c.b16 %v551, %v550
        %v565 = vpack.c.b16 %v553, %v552
        %v566 = vpack.c.b16 %v555, %v554
        %v567 = vpack.c.b16 %v557, %v556
        %v568 = vpack.c.b16 %v559, %v558
        %v569 = vpack.c.b16 %v561, %v560
        %578 = vmatprep.subr.bf16.mxu0 0
        %579 = vmatpush1.bf16.msra.mxu0 %v569
        %580 = vmatprep.subr.bf16.mxu0 0
        %581 = vmatpush1.bf16.msra.mxu0 %v568
        %582 = vmatprep.subr.bf16.mxu0 0
        %583 = vmatpush1.bf16.msra.mxu0 %v567
        %584 = vmatprep.subr.bf16.mxu0 0
        %585 = vmatpush1.bf16.msra.mxu0 %v566
        %586 = vmatprep.subr.bf16.mxu0 0
        %587 = vmatpush1.bf16.msra.mxu0 %v565
        %588 = vmatprep.subr.bf16.mxu0 0
        %589 = vmatpush1.bf16.msra.mxu0 %v564
        %590 = vmatprep.subr.bf16.mxu0 0
        %591 = vmatpush1.bf16.msra.mxu0 %v563
        %592 = vmatprep.subr.bf16.mxu0 0
        %593 = vmatpush1.bf16.msra.mxu0 %v562
        %594 = vmatprep.subr.bf16.mxu0 0
        %595 = vmatpush2.bf16.msra.mxu0 0
        %596 = vmatprep.subr.bf16.mxu0 0
        %597 = vmatpush2.bf16.msra.mxu0 0
        %598 = vmatprep.subr.bf16.mxu0 0
        %599 = vmatpush2.bf16.msra.mxu0 0
        %600 = vmatprep.subr.bf16.mxu0 0
        %601 = vmatpush2.bf16.msra.mxu0 0
        %602 = vmatprep.subr.bf16.mxu0 0
        %603 = vmatpush2.bf16.msra.mxu0 0
        %604 = vmatprep.subr.bf16.mxu0 0
        %605 = vmatpush2.bf16.msra.mxu0 0
        %606 = vmatprep.subr.bf16.mxu0 0
        %607 = vmatpush2.bf16.msra.mxu0 0
        %608 = vmatprep.subr.bf16.mxu0 0
        %609 = vmatpush2.bf16.msra.mxu0 0
        %610 = vmatprep.mubr.bf16.mxu0 0
        %611 = vmatmul.mubr.bf16.gmra.mxu0 %v505
        %v612 = vpop.f32.mrf.mxu0
        %v613 = vadd.f32 %v528, %v612
        %v614 = vpop.f32.mrf.mxu0
        %v615 = vpop.f32.mrf.mxu0
        %v616 = vadd.f32 %v528, %v615
        %v617 = vpop.f32.mrf.mxu0
        %618 = vmatprep.mubr.bf16.mxu0 0
        %619 = vmatmul.mubr.bf16.gmra.mxu0 %v506
        %v620 = vpop.f32.mrf.mxu0
        %v621 = vadd.f32 %v528, %v620
        %v622 = vpop.f32.mrf.mxu0
        %v623 = vpop.f32.mrf.mxu0
        %v624 = vadd.f32 %v528, %v623
        %v625 = vpop.f32.mrf.mxu0
        %626 = vdwg.mxu0
        %627 = vst [vmem:[%s308] sm:$0xff] %v613
        %628 = vst [vmem:[%s308 + $0x8] sm:$0xff] %v616
        %629 = vst [vmem:[%s308 + $0x10] sm:$0xff] %v621
        %630 = vst [vmem:[%s308 + $0x18] sm:$0xff] %v624
        %s631 = sand.u32 %s146, 1
        %s632 = scalar_lea.sflag [#allocation4], %s631
        %s633 = sand.u32 %s146, 1
        %s634 = smul.addr %s633, 32
        %s635 = scalar_lea.vmem [#allocation8], %s634
        %s636 = sand.u32 %s172, 1
        %s637 = scalar_lea.sflag [#allocation10], %s636
        %s638 = sand.u32 %s172, 1
        %s639 = scalar_lea.vmem [#allocation9], %s638
        // Predicated region
        $region53: #{tpu_custom_call.1} parent=39 // pred_check
          %p640 = pneg %p156
        $region54: #{tpu_custom_call.1} parent=39 // pred_check_branch
          %642 = sbr.rel (%p640) target = $region56
        $region55: #{tpu_custom_call.1} parent=39 // pred_region
          %s643 = smul.u32 4, %s28
          %s644 = ssub.s32 9, %s643
          %p645 = scmp.lt.s32.totalorder %s644, 4
          %s646 = scalar_select %p645, %s644, 4
          %s647 = smul.u32 128, %s646
          %s649 = ssub.s32 512, %s647
          %650 = vsyncadd %s632, %s649
          %p651 = scmp.ne.s32.totalorder 0, %s647
          %s652 = smul.addr %s643, 128
          %s653 = scalar_lea.hbm %s5, %s652
          %s654 = smul.u32 8, %s646
          %s655 = sshll.u32 %s635, 4
          %s656 = int_to_ptr.vmem [resolvable:$true] %s655
          %s657 = sshll.u32 %s654, 4
          %661 = dma.vmem_to_hbm [thread:$0]  (%p651), %s656, %s657, %s653, %s632, 128, 128, 8
        $region56: #{tpu_custom_call.1} parent=39 // pred_fallthru
          _
        // Predicated region
        $region57: #{tpu_custom_call.1} parent=39 // pred_check
          %p662 = pneg %p182
        $region58: #{tpu_custom_call.1} parent=39 // pred_check_branch
          %664 = sbr.rel (%p662) target = $region60
        $region59: #{tpu_custom_call.1} parent=39 // pred_region
          %s666 = ssub.s32 16, 16
          %667 = vsyncadd %s637, %s666
          %s668 = smul.addr %s28, 16
          %s669 = scalar_lea.hbm %s6, %s668
          %s671 = sshll.u32 %s639, 4
          %s672 = int_to_ptr.vmem [resolvable:$true] %s671
          %674 = dma.vmem_to_hbm [thread:$0]  %s672, 16, %s669, %s637
        $region60: #{tpu_custom_call.1} parent=39 // pred_fallthru
          _
      $region40: #{tpu_custom_call.1} parent=5 // pred_fallthru
        _
      %p675 = scmp.le.s32.totalorder 2, %s23
      // Predicated region
      $region61: #{tpu_custom_call.1} parent=5 // pred_check
        %p676 = pneg %p675
      $region62: #{tpu_custom_call.1} parent=5 // pred_check_branch
        %678 = sbr.rel (%p676) target = $region64
      $region63: #{tpu_custom_call.1} parent=5 // pred_region
        %s679 = ssub.s32 %s23, 2
        // Predicated region
        $region65: #{tpu_custom_call.1} parent=63 // pred_check
          %p680 = pneg %p162
        $region66: #{tpu_custom_call.1} parent=63 // pred_check_branch
          %682 = sbr.rel (%p680) target = $region68
        $region67: #{tpu_custom_call.1} parent=63 // pred_region
          %s683 = sand.u32 %s147, 1
          %s684 = scalar_lea.sflag [#allocation4], %s683
          %s685 = sand.u32 %s147, 1
          %s686 = smul.addr %s685, 32
          %s687 = scalar_lea.vmem [#allocation8], %s686
          %688 = dma.done %s684, 512
        $region68: #{tpu_custom_call.1} parent=63 // pred_fallthru
          _
        // Predicated region
        $region69: #{tpu_custom_call.1} parent=63 // pred_check
          %p689 = pneg %p188
        $region70: #{tpu_custom_call.1} parent=63 // pred_check_branch
          %691 = sbr.rel (%p689) target = $region72
        $region71: #{tpu_custom_call.1} parent=63 // pred_region
          %s692 = sand.u32 %s173, 1
          %s693 = scalar_lea.sflag [#allocation10], %s692
          %s694 = sand.u32 %s173, 1
          %s695 = scalar_lea.vmem [#allocation9], %s694
          %696 = dma.done %s693, 16
        $region72: #{tpu_custom_call.1} parent=63 // pred_fallthru
          _
      $region64: #{tpu_custom_call.1} parent=5 // pred_fallthru
        _
    $region6: #{tpu_custom_call.1} parent=1 // loop_footer
      %s27 = sadd.s32 1, %s23
    $region7: #{tpu_custom_call.1} parent=1 // loop_footer_branch
      %22 = sbr.rel target = $region3
    $region8: #{tpu_custom_call.1} parent=1 // loop_exit
      _
    %697 = vsyncpa [#allocation3], 1
    %s698 = scalar_lea.sflag [#allocation3], 1
    %699 = vsyncpa %s698, 1
    %700 = vsyncpa [#allocation6], 1
    %701 = vsyncpa [#allocation4], 1
    %s702 = scalar_lea.sflag [#allocation4], 1
    %703 = vsyncpa %s702, 1
    %704 = vsyncpa [#allocation10], 1
    %s705 = scalar_lea.sflag [#allocation10], 1
    %706 = vsyncpa %s705, 1

// kernel: tpu_custom_call.1
$region0: #{tpu_custom_call.1}
  #allocation0 [shape = 'u32[]', space=smem, size = 0x4, offset = 0x4, fixed_abs, tag = 'smem constant byte address 0x4 - core index']
  #allocation1 [shape = 'u32[144,128]{1,0:T(1,128)}', space=vmem, size = 0x12000, scoped, tag = 'internal scratch']
  %s0 = inlined_call_operand.hbm [shape: f32[72,128], index: 0, kind: input, shape index: {}]
  %s1 = inlined_call_operand.hbm [shape: bf16[128,128], index: 1, kind: input, shape index: {}]
  %s2 = inlined_call_operand.vmem [shape: f32[1,128], index: 2, kind: input, shape index: {}]
  %s3 = inlined_call_operand.hbm [shape: bf16[128,128], index: 3, kind: input, shape index: {}]
  %s4 = inlined_call_operand.vmem [shape: f32[1,128], index: 4, kind: input, shape index: {}]
  %s5 = inlined_call_operand.hbm [shape: f32[72,128], index: 5, kind: output, shape index: {0}]
  %s6 = inlined_call_operand.hbm [shape: f32[3,1,128], index: 6, kind: output, shape index: {1}]
  %7 = xla_tuple %s5, %s6
  %s8 = sld [smem:[#allocation0]]
  $region73: #{tpu_custom_call.1} parent=0
    _
  %s10 = ssub.s32 1, %s8
  %s11 = scalar_select 0, %s10, %s8
  $region1: #{tpu_custom_call.1} parent=0
    #allocation2 [shape = 'u8[32768]{0}', space=vmem, size = 0x8000, scoped, tag = 'input window, operand 0']
    #allocation3 [shape = 's32[2]{0}', space=sflag, size = 0x8, scoped, tag = 'scoped memory for tpu_custom_call.1']
    #allocation4 [shape = 's32[2]{0}', space=sflag, size = 0x8, scoped, tag = 'scoped memory for tpu_custom_call.1']
    #allocation5 [shape = 'u8[32768]{0}', space=vmem, size = 0x8000, scoped, tag = 'input window, operand 1, single buffered']
    #allocation6 [shape = 's32[1]{0}', space=sflag, size = 0x4, scoped, tag = 'scoped memory for tpu_custom_call.1']
    #allocation7 [shape = 'u8[32768]{0}', space=vmem, size = 0x8000, scoped, tag = 'input window, operand 3, single buffered']
    #allocation8 [shape = 'u8[32768]{0}', space=vmem, size = 0x8000, scoped, tag = 'output window, operand 0']
    #allocation9 [shape = 'u8[1024]{0}', space=vmem, size = 0x400, scoped, tag = 'output window, operand 1']
    #allocation10 [shape = 's32[2]{0}', space=sflag, size = 0x8, scoped, tag = 'scoped memory for tpu_custom_call.1']
    %12 = vsyncpa [#allocation3], 0
    %s13 = scalar_lea.sflag [#allocation3], 1
    %14 = vsyncpa %s13, 0
    %15 = vsyncpa [#allocation6], 0
    %16 = vsyncpa [#allocation4], 0
    %s17 = scalar_lea.sflag [#allocation4], 1
    %18 = vsyncpa %s17, 0
    %19 = vsyncpa [#allocation10], 0
    %s20 = scalar_lea.sflag [#allocation10], 1
    %21 = vsyncpa %s20, 0
    loop: start=0, step=1, limit=5
    $region2: #{tpu_custom_call.1} parent=1 // loop_pre_header
      _
    $region3: #{tpu_custom_call.1} parent=1 // loop_header
      %s23 = sphi 0, %s27
      %p24 = scmp.ge.s32.totalorder %s23, 5
      %s33 = sphi 0, %s35
      %s36 = sphi 0, %s33
      %s37 = sphi 0, %s36
      %s53 = sphi 0, %s37
      %s57 = sphi 0, %s57
      %s59 = sphi 0, %s57
      %s60 = sphi 0, %s59
      %s74 = sphi 0, %s60
      %s78 = sphi 0, %s78
      %s80 = sphi 0, %s78
      %s81 = sphi 0, %s80
      %s95 = sphi 0, %s81
      %s99 = sphi 0, %s99
      %s101 = sphi 0, %s99
      %s102 = sphi 0, %s101
      %s116 = sphi 0, %s102
      %s120 = sphi 0, %s120
      %s122 = sphi 0, %s120
      %s123 = sphi 0, %s122
      %s137 = sphi 0, %s123
      %s143 = sphi 0, %s145
      %s146 = sphi 0, %s143
      %s147 = sphi 0, %s146
      %s163 = sphi 0, %s147
      %s169 = sphi 0, %s171
      %s172 = sphi 0, %s169
      %s173 = sphi 0, %s172
      %s189 = sphi 0, %s173
    $region4: #{tpu_custom_call.1} parent=1 // loop_header_branch
      %26 = sbr.rel (%p24) target = $region8
    $region5: #{tpu_custom_call.1} parent=1 // loop_body
      %s28 = ssub.s32 %s23, 1
      %s29 = ssub.s32 %s23, 2
      %s30 = sadd.s32 %s23, 1
      %s31 = ssub.s32 %s23, %s30
      %p32 = scmp.eq.s32.totalorder %s31, 0
      %s34 = sadd.s32 %s33, 1
      %s35 = scalar_select %p32, %s33, %s34
      %p38 = pneg %p32
      %p39 = scmp.eq.s32.totalorder %s23, 2
      %p40 = por %p38, %p39
      %p41 = scmp.ne.s32.totalorder %s33, %s36
      %p42 = scmp.eq.s32.totalorder %s23, 0
      %p43 = por %p41, %p42
      %p44 = scmp.ne.s32.totalorder %s33, %s36
      %p45 = scmp.eq.s32.totalorder %s28, 2
      %p46 = por %p44, %p45
      %p47 = scmp.ne.s32.totalorder %s36, %s37
      %p48 = scmp.eq.s32.totalorder %s28, 0
      %p49 = por %p47, %p48
      %p50 = scmp.ne.s32.totalorder %s36, %s37
      %p51 = scmp.eq.s32.totalorder %s29, 2
      %p52 = por %p50, %p51
      %p54 = scmp.ne.s32.totalorder %s37, %s53
      %p55 = scmp.eq.s32.totalorder %s29, 0
      %p56 = por %p54, %p55
      %s58 = sadd.s32 %s57, 1
      %p61 = scmp.eq.s32.totalorder %s23, 2
      %p62 = scmp.ne.s32.totalorder %s57, %s59
      %p63 = scmp.eq.s32.totalorder %s23, 0
      %p64 = por %p62, %p63
      %p65 = scmp.ne.s32.totalorder %s57, %s59
      %p66 = scmp.eq.s32.totalorder %s28, 2
      %p67 = por %p65, %p66
      %p68 = scmp.ne.s32.totalorder %s59, %s60
      %p69 = scmp.eq.s32.totalorder %s28, 0
      %p70 = por %p68, %p69
      %p71 = scmp.ne.s32.totalorder %s59, %s60
      %p72 = scmp.eq.s32.totalorder %s29, 2
      %p73 = por %p71, %p72
      %p75 = scmp.ne.s32.totalorder %s60, %s74
      %p76 = scmp.eq.s32.totalorder %s29, 0
      %p77 = por %p75, %p76
      %s79 = sadd.s32 %s78, 1
      %p82 = scmp.eq.s32.totalorder %s23, 2
      %p83 = scmp.ne.s32.totalorder %s78, %s80
      %p84 = scmp.eq.s32.totalorder %s23, 0
      %p85 = por %p83, %p84
      %p86 = scmp.ne.s32.totalorder %s78, %s80
      %p87 = scmp.eq.s32.totalorder %s28, 2
      %p88 = por %p86, %p87
      %p89 = scmp.ne.s32.totalorder %s80, %s81
      %p90 = scmp.eq.s32.totalorder %s28, 0
      %p91 = por %p89, %p90
      %p92 = scmp.ne.s32.totalorder %s80, %s81
      %p93 = scmp.eq.s32.totalorder %s29, 2
      %p94 = por %p92, %p93
      %p96 = scmp.ne.s32.totalorder %s81, %s95
      %p97 = scmp.eq.s32.totalorder %s29, 0
      %p98 = por %p96, %p97
      %s100 = sadd.s32 %s99, 1
      %p103 = scmp.eq.s32.totalorder %s23, 2
      %p104 = scmp.ne.s32.totalorder %s99, %s101
      %p105 = scmp.eq.s32.totalorder %s23, 0
      %p106 = por %p104, %p105
      %p107 = scmp.ne.s32.totalorder %s99, %s101
      %p108 = scmp.eq.s32.totalorder %s28, 2
      %p109 = por %p107, %p108
      %p110 = scmp.ne.s32.totalorder %s101, %s102
      %p111 = scmp.eq.s32.totalorder %s28, 0
      %p112 = por %p110, %p111
      %p113 = scmp.ne.s32.totalorder %s101, %s102
      %p114 = scmp.eq.s32.totalorder %s29, 2
      %p115 = por %p113, %p114
      %p117 = scmp.ne.s32.totalorder %s102, %s116
      %p118 = scmp.eq.s32.totalorder %s29, 0
      %p119 = por %p117, %p118
      %s121 = sadd.s32 %s120, 1
      %p124 = scmp.eq.s32.totalorder %s23, 2
      %p125 = scmp.ne.s32.totalorder %s120, %s122
      %p126 = scmp.eq.s32.totalorder %s23, 0
      %p127 = por %p125, %p126
      %p128 = scmp.ne.s32.totalorder %s120, %s122
      %p129 = scmp.eq.s32.totalorder %s28, 2
      %p130 = por %p128, %p129
      %p131 = scmp.ne.s32.totalorder %s122, %s123
      %p132 = scmp.eq.s32.totalorder %s28, 0
      %p133 = por %p131, %p132
      %p134 = scmp.ne.s32.totalorder %s122, %s123
      %p135 = scmp.eq.s32.totalorder %s29, 2
      %p136 = por %p134, %p135
      %p138 = scmp.ne.s32.totalorder %s123, %s137
      %p139 = scmp.eq.s32.totalorder %s29, 0
      %p140 = por %p138, %p139
      %s141 = ssub.s32 %s23, %s30
      %p142 = scmp.eq.s32.totalorder %s141, 0
      %s144 = sadd.s32 %s143, 1
      %s145 = scalar_select %p142, %s143, %s144
      %p148 = pneg %p142
      %p149 = scmp.eq.s32.totalorder %s23, 2
      %p150 = por %p148, %p149
      %p151 = scmp.ne.s32.totalorder %s143, %s146
      %p152 = scmp.eq.s32.totalorder %s23, 0
      %p153 = por %p151, %p152
      %p154 = scmp.ne.s32.totalorder %s143, %s146
      %p155 = scmp.eq.s32.totalorder %s28, 2
      %p156 = por %p154, %p155
      %p157 = scmp.ne.s32.totalorder %s146, %s147
      %p158 = scmp.eq.s32.totalorder %s28, 0
      %p159 = por %p157, %p158
      %p160 = scmp.ne.s32.totalorder %s146, %s147
      %p161 = scmp.eq.s32.totalorder %s29, 2
      %p162 = por %p160, %p161
      %p164 = scmp.ne.s32.totalorder %s147, %s163
      %p165 = scmp.eq.s32.totalorder %s29, 0
      %p166 = por %p164, %p165
      %s167 = ssub.s32 %s23, %s30
      %p168 = scmp.eq.s32.totalorder %s167, 0
      %s170 = sadd.s32 %s169, 1
      %s171 = scalar_select %p168, %s169, %s170
      %p174 = pneg %p168
      %p175 = scmp.eq.s32.totalorder %s23, 2
      %p176 = por %p174, %p175
      %p177 = scmp.ne.s32.totalorder %s169, %s172
      %p178 = scmp.eq.s32.totalorder %s23, 0
      %p179 = por %p177, %p178
      %p180 = scmp.ne.s32.totalorder %s169, %s172
      %p181 = scmp.eq.s32.totalorder %s28, 2
      %p182 = por %p180, %p181
      %p183 = scmp.ne.s32.totalorder %s172, %s173
      %p184 = scmp.eq.s32.totalorder %s28, 0
      %p185 = por %p183, %p184
      %p186 = scmp.ne.s32.totalorder %s172, %s173
      %p187 = scmp.eq.s32.totalorder %s29, 2
      %p188 = por %p186, %p187
      %p190 = scmp.ne.s32.totalorder %s173, %s189
      %p191 = scmp.eq.s32.totalorder %s29, 0
      %p192 = por %p190, %p191
      %p193 = scmp.le.s32.totalorder 1, %s23
      %p194 = scmp.lt.s32.totalorder %s23, 4
      %p195 = pnand %p193, %p194
      %p196 = pneg %p195
      // Predicated region
      $region9: #{tpu_custom_call.1} parent=5 // pred_check
        _
      $region10: #{tpu_custom_call.1} parent=5 // pred_check_branch
        %198 = sbr.rel (%p195) target = $region12
      $region11: #{tpu_custom_call.1} parent=5 // pred_region
        %s199 = ssub.s32 %s23, 1
        // Predicated region
        $region13: #{tpu_custom_call.1} parent=11 // pred_check
          %p200 = pneg %p70
        $region14: #{tpu_custom_call.1} parent=11 // pred_check_branch
          %202 = sbr.rel (%p200) target = $region16
        $region15: #{tpu_custom_call.1} parent=11 // pred_region
          %s204 = ssub.s32 1024, 1024
          %205 = vsyncadd [#allocation6], %s204
          %s206 = sshll.u32 [#allocation5], 4
          %s207 = int_to_ptr.vmem [resolvable:$true] %s206
          %212 = dma.hbm_to_vmem [thread:$0]  %s1, 1024, %s207, [#allocation6], 64, 64, 4
        $region16: #{tpu_custom_call.1} parent=11 // pred_fallthru
          _
        // Predicated region
        $region17: #{tpu_custom_call.1} parent=11 // pred_check
          %p213 = pneg %p91
        $region18: #{tpu_custom_call.1} parent=11 // pred_check_branch
          %215 = sbr.rel (%p213) target = $region20
        $region19: #{tpu_custom_call.1} parent=11 // pred_region
          _
        $region20: #{tpu_custom_call.1} parent=11 // pred_fallthru
          _
        // Predicated region
        $region21: #{tpu_custom_call.1} parent=11 // pred_check
          %p216 = pneg %p112
        $region22: #{tpu_custom_call.1} parent=11 // pred_check_branch
          %218 = sbr.rel (%p216) target = $region24
        $region23: #{tpu_custom_call.1} parent=11 // pred_region
          %s220 = ssub.s32 1024, 1024
          %221 = vsyncadd [#allocation6], %s220
          %s222 = sshll.u32 [#allocation7], 4
          %s223 = int_to_ptr.vmem [resolvable:$true] %s222
          %228 = dma.hbm_to_vmem [thread:$0]  %s3, 1024, %s223, [#allocation6], 64, 64, 4
        $region24: #{tpu_custom_call.1} parent=11 // pred_fallthru
          _
        // Predicated region
        $region25: #{tpu_custom_call.1} parent=11 // pred_check
          %p229 = pneg %p133
        $region26: #{tpu_custom_call.1} parent=11 // pred_check_branch
          %231 = sbr.rel (%p229) target = $region28
        $region27: #{tpu_custom_call.1} parent=11 // pred_region
          _
        $region28: #{tpu_custom_call.1} parent=11 // pred_fallthru
          _
      $region12: #{tpu_custom_call.1} parent=5 // pred_fallthru
        _
      %p232 = scmp.lt.s32.totalorder %s23, 3
      // Predicated region
      $region29: #{tpu_custom_call.1} parent=5 // pred_check
        %p233 = pneg %p232
      $region30: #{tpu_custom_call.1} parent=5 // pred_check_branch
        %235 = sbr.rel (%p233) target = $region32
      $region31: #{tpu_custom_call.1} parent=5 // pred_region
        // Predicated region
        $region33: #{tpu_custom_call.1} parent=31 // pred_check
          %p236 = pneg %p43
        $region34: #{tpu_custom_call.1} parent=31 // pred_check_branch
          %238 = sbr.rel (%p236) target = $region36
        $region35: #{tpu_custom_call.1} parent=31 // pred_region
          %s239 = sand.u32 %s33, 1
          %s240 = scalar_lea.sflag [#allocation3], %s239
          %s241 = sand.u32 %s33, 1
          %s242 = smul.addr %s241, 32
          %s243 = scalar_lea.vmem [#allocation2], %s242
          %s244 = smul.u32 4, %s23
          %s245 = ssub.s32 9, %s244
          %p246 = scmp.lt.s32.totalorder %s245, 4
          %s247 = scalar_select %p246, %s245, 4
          %s248 = smul.u32 128, %s247
          %s250 = ssub.s32 512, %s248
          %251 = vsyncadd %s240, %s250
          %p252 = scmp.ne.s32.totalorder 0, %s248
          %s253 = smul.addr %s244, 128
          %s254 = scalar_lea.hbm %s0, %s253
          %s255 = smul.u32 8, %s247
          %s256 = sshll.u32 %s243, 4
          %s257 = int_to_ptr.vmem [resolvable:$true] %s256
          %s258 = sshll.u32 %s255, 4
          %262 = dma.hbm_to_vmem [thread:$0]  (%p252), %s254, %s258, %s257, %s240, 128, 128, 8
        $region36: #{tpu_custom_call.1} parent=31 // pred_fallthru
          _
      $region32: #{tpu_custom_call.1} parent=5 // pred_fallthru
        _
      %p263 = scmp.le.s32.totalorder 1, %s23
      %p264 = scmp.lt.s32.totalorder %s23, 4
      %p265 = pnand %p263, %p264
      %p266 = pneg %p265
      // Predicated region
      $region37: #{tpu_custom_call.1} parent=5 // pred_check
        _
      $region38: #{tpu_custom_call.1} parent=5 // pred_check_branch
        %268 = sbr.rel (%p265) target = $region40
      $region39: #{tpu_custom_call.1} parent=5 // pred_region
        %s269 = ssub.s32 %s23, 1
        %s270 = sand.u32 %s36, 1
        %s271 = scalar_lea.sflag [#allocation3], %s270
        %s272 = sand.u32 %s36, 1
        %s273 = smul.addr %s272, 32
        %s274 = scalar_lea.vmem [#allocation2], %s273
        // Predicated region
        $region41: #{tpu_custom_call.1} parent=39 // pred_check
          %p275 = pneg %p49
        $region42: #{tpu_custom_call.1} parent=39 // pred_check_branch
          %277 = sbr.rel (%p275) target = $region44
        $region43: #{tpu_custom_call.1} parent=39 // pred_region
          %278 = dma.done %s271, 512
        $region44: #{tpu_custom_call.1} parent=39 // pred_fallthru
          _
        // Predicated region
        $region45: #{tpu_custom_call.1} parent=39 // pred_check
          %p279 = pneg %p70
        $region46: #{tpu_custom_call.1} parent=39 // pred_check_branch
          %281 = sbr.rel (%p279) target = $region48
        $region47: #{tpu_custom_call.1} parent=39 // pred_region
          %282 = dma.done [#allocation6], 1024
        $region48: #{tpu_custom_call.1} parent=39 // pred_fallthru
          _
        // Predicated region
        $region49: #{tpu_custom_call.1} parent=39 // pred_check
          %p283 = pneg %p112
        $region50: #{tpu_custom_call.1} parent=39 // pred_check_branch
          %285 = sbr.rel (%p283) target = $region52
        $region51: #{tpu_custom_call.1} parent=39 // pred_region
          %286 = dma.done [#allocation6], 1024
        $region52: #{tpu_custom_call.1} parent=39 // pred_fallthru
          _
        %s287 = sand.u32 %s36, 1
        %s288 = scalar_lea.sflag [#allocation3], %s287
        %s289 = sand.u32 %s36, 1
        %s290 = smul.addr %s289, 32
        %s291 = scalar_lea.vmem [#allocation2], %s290
        %p292 = pneg %p49
        %p293 = pneg %p46
        %p294 = pneg %p70
        %p295 = pneg %p67
        %p296 = pneg %p91
        %p297 = pneg %p88
        %p298 = pneg %p112
        %p299 = pneg %p109
        %p300 = pneg %p133
        %p301 = pneg %p130
        %p302 = pneg %p159
        %p303 = pneg %p156
        %s304 = sand.u32 %s146, 1
        %s305 = scalar_lea.sflag [#allocation4], %s304
        %s306 = sand.u32 %s146, 1
        %s307 = smul.addr %s306, 32
        %s308 = scalar_lea.vmem [#allocation8], %s307
        %p309 = pneg %p185
        %p310 = pneg %p182
        %s311 = sand.u32 %s172, 1
        %s312 = scalar_lea.sflag [#allocation10], %s311
        %s313 = sand.u32 %s172, 1
        %s314 = scalar_lea.vmem [#allocation9], %s313
        %s315 = smul.u32 4, %s28
        %s316 = ssub.s32 9, %s315
        %p317 = scmp.lt.s32.totalorder %s316, 4
        %s318 = scalar_select %p317, %s316, 4
        %s319 = smul.u32 128, %s318
        %s320 = smul.u32 4, %s28
        %s321 = ssub.s32 9, %s320
        %p322 = scmp.lt.s32.totalorder %s321, 4
        %s323 = scalar_select %p322, %s321, 4
        %s324 = smul.u32 128, %s323
        %v326 = vld [vmem:[%s274] sm:$0xff]
        %v327 = vld [vmem:[%s274 + $0x8] sm:$0xff]
        %v328 = vld [vmem:[%s274 + $0x10] sm:$0xff]
        %v329 = vld [vmem:[%s274 + $0x18] sm:$0xff]
        %v330 = vpack.c.bf16 %v327, %v326
        %v331 = vpack.c.bf16 %v329, %v328
        %v332 = vld [vmem:[#allocation5] sm:$0xf]
        %v333 = vld [vmem:[#allocation5 + $0x4] sm:$0xf]
        %v334 = vld [vmem:[#allocation5 + $0x8] sm:$0xf]
        %v335 = vld [vmem:[#allocation5 + $0xc] sm:$0xf]
        %v336 = vld [vmem:[#allocation5 + $0x10] sm:$0xf]
        %v337 = vld [vmem:[#allocation5 + $0x14] sm:$0xf]
        %v338 = vld [vmem:[#allocation5 + $0x18] sm:$0xf]
        %v339 = vld [vmem:[#allocation5 + $0x1c] sm:$0xf]
        %v340 = vld [vmem:[#allocation5 + $0x20] sm:$0xf]
        %v341 = vld [vmem:[#allocation5 + $0x24] sm:$0xf]
        %v342 = vld [vmem:[#allocation5 + $0x28] sm:$0xf]
        %v343 = vld [vmem:[#allocation5 + $0x2c] sm:$0xf]
        %v344 = vld [vmem:[#allocation5 + $0x30] sm:$0xf]
        %v345 = vld [vmem:[#allocation5 + $0x34] sm:$0xf]
        %v346 = vld [vmem:[#allocation5 + $0x38] sm:$0xf]
        %v347 = vld [vmem:[#allocation5 + $0x3c] sm:$0xf]
        %v348 = vld [vmem:[%s2] sm:$0x1]
        %v350 = vlaneseq
        %v351 = vshrl.u32 %v350, 7
        %v352 = vsub.s32 0, %v351
        %v353 = vrot.slane %v348, %v352
        %v371 = vunpack.c.l.b16 %v332
        %v372 = vunpack.c.l.b16 %v333
        %v373 = vunpack.c.l.b16 %v334
        %v374 = vunpack.c.l.b16 %v335
        %v375 = vunpack.c.l.b16 %v336
        %v376 = vunpack.c.l.b16 %v337
        %v377 = vunpack.c.l.b16 %v338
        %v378 = vunpack.c.l.b16 %v339
        %v379 = vunpack.c.l.b16 %v340
        %v380 = vunpack.c.l.b16 %v341
        %v381 = vunpack.c.l.b16 %v342
        %v382 = vunpack.c.l.b16 %v343
        %v383 = vunpack.c.l.b16 %v344
        %v384 = vunpack.c.l.b16 %v345
        %v385 = vunpack.c.l.b16 %v346
        %v386 = vunpack.c.l.b16 %v347
        %v387 = vpack.c.b16 %v372, %v371
        %v388 = vpack.c.b16 %v374, %v373
        %v389 = vpack.c.b16 %v376, %v375
        %v390 = vpack.c.b16 %v378, %v377
        %v391 = vpack.c.b16 %v380, %v379
        %v392 = vpack.c.b16 %v382, %v381
        %v393 = vpack.c.b16 %v384, %v383
        %v394 = vpack.c.b16 %v386, %v385
        %403 = vmatprep.subr.bf16.mxu0 0
        %404 = vmatpush1.bf16.msra.mxu0 %v394
        %405 = vmatprep.subr.bf16.mxu0 0
        %406 = vmatpush1.bf16.msra.mxu0 %v393
        %407 = vmatprep.subr.bf16.mxu0 0
        %408 = vmatpush1.bf16.msra.mxu0 %v392
        %409 = vmatprep.subr.bf16.mxu0 0
        %410 = vmatpush1.bf16.msra.mxu0 %v391
        %411 = vmatprep.subr.bf16.mxu0 0
        %412 = vmatpush1.bf16.msra.mxu0 %v390
        %413 = vmatprep.subr.bf16.mxu0 0
        %414 = vmatpush1.bf16.msra.mxu0 %v389
        %415 = vmatprep.subr.bf16.mxu0 0
        %416 = vmatpush1.bf16.msra.mxu0 %v388
        %417 = vmatprep.subr.bf16.mxu0 0
        %418 = vmatpush1.bf16.msra.mxu0 %v387
        %419 = vmatprep.subr.bf16.mxu0 0
        %420 = vmatpush2.bf16.msra.mxu0 0
        %421 = vmatprep.subr.bf16.mxu0 0
        %422 = vmatpush2.bf16.msra.mxu0 0
        %423 = vmatprep.subr.bf16.mxu0 0
        %424 = vmatpush2.bf16.msra.mxu0 0
        %425 = vmatprep.subr.bf16.mxu0 0
        %426 = vmatpush2.bf16.msra.mxu0 0
        %427 = vmatprep.subr.bf16.mxu0 0
        %428 = vmatpush2.bf16.msra.mxu0 0
        %429 = vmatprep.subr.bf16.mxu0 0
        %430 = vmatpush2.bf16.msra.mxu0 0
        %431 = vmatprep.subr.bf16.mxu0 0
        %432 = vmatpush2.bf16.msra.mxu0 0
        %433 = vmatprep.subr.bf16.mxu0 0
        %434 = vmatpush2.bf16.msra.mxu0 0
        %435 = vmatprep.mubr.bf16.mxu0 0
        %436 = vmatmul.mubr.bf16.gmra.mxu0 %v330
        %v437 = vpop.f32.mrf.mxu0
        %v438 = vadd.f32 %v353, %v437
        %v439 = vpop.f32.mrf.mxu0
        %v440 = vpop.f32.mrf.mxu0
        %v441 = vadd.f32 %v353, %v440
        %v442 = vpop.f32.mrf.mxu0
        %443 = vmatprep.mubr.bf16.mxu0 0
        %444 = vmatmul.mubr.bf16.gmra.mxu0 %v331
        %v445 = vpop.f32.mrf.mxu0
        %v446 = vadd.f32 %v353, %v445
        %v447 = vpop.f32.mrf.mxu0
        %v448 = vpop.f32.mrf.mxu0
        %v449 = vadd.f32 %v353, %v448
        %v450 = vpop.f32.mrf.mxu0
        %451 = vdwg.mxu0
        %v452 = vmul.f32 %v438, 0.5
        %v453 = vmul.f32 %v441, 0.5
        %v454 = vmul.f32 %v446, 0.5
        %v455 = vmul.f32 %v449, 0.5
        %v456 = vtanh.pop %v452
        %v457 = vtanh.pop %v453
        %v458 = vtanh.pop %v454
        %v459 = vtanh.pop %v455
        %v460 = vadd.f32 %v456, 1.0
        %v461 = vadd.f32 %v457, 1.0
        %v462 = vadd.f32 %v458, 1.0
        %v463 = vadd.f32 %v459, 1.0
        %v464 = vmul.f32 %v460, 0.5
        %v465 = vmul.f32 %v461, 0.5
        %v466 = vmul.f32 %v462, 0.5
        %v467 = vmul.f32 %v463, 0.5
        %s468 = smul.u32 %s28, 32
        %v469 = vlaneseq
        %v470 = vshrl.u32 %v469, 7
        %v471 = vadd.s32 %v470, 8
        %v472 = vadd.s32 %v470, 16
        %v473 = vadd.s32 %v470, 24
        %v474 = vstv %s468
        %v475 = vadd.s32 %v474, %v470
        %v476 = vadd.s32 %v474, %v471
        %v477 = vadd.s32 %v474, %v472
        %v478 = vadd.s32 %v474, %v473
        %vm479 = vcmp.lt.s32.totalorder %v475, 72
        %vm480 = vcmp.lt.s32.totalorder %v476, 72
        %vm481 = vcmp.lt.s32.totalorder %v477, 72
        %vm482 = vcmp.lt.s32.totalorder %v478, 72
        %v483 = vsel %vm479, 1, 0
        %v484 = vsel %vm480, 1, 0
        %v485 = vsel %vm481, 1, 0
        %v486 = vsel %vm482, 1, 0
        %vm487 = vcmp.eq.s32.totalorder %v483, 1
        %vm488 = vcmp.eq.s32.totalorder %v484, 1
        %vm489 = vcmp.eq.s32.totalorder %v485, 1
        %vm490 = vcmp.eq.s32.totalorder %v486, 1
        %v491 = vsel %vm487, %v464, 0.0
        %v492 = vsel %vm488, %v465, 0.0
        %v493 = vsel %vm489, %v466, 0.0
        %v494 = vsel %vm490, %v467, 0.0
        %v495 = vadd.f32 %v491, %v492
        %v496 = vadd.f32 %v495, %v493
        %v497 = vadd.f32 %v496, %v494
        %v498 = vrot.slane %v497, 4
        %v499 = vadd.f32 %v497, %v498
        %v500 = vrot.slane %v499, 2
        %v501 = vadd.f32 %v499, %v500
        %v502 = vrot.slane %v501, 1
        %v503 = vadd.f32 %v501, %v502
        %504 = vst [vmem:[%s314] sm:$0x1] %v503
        %v505 = vpack.c.bf16 %v465, %v464
        %v506 = vpack.c.bf16 %v467, %v466
        %v507 = vld [vmem:[#allocation7] sm:$0xf]
        %v508 = vld [vmem:[#allocation7 + $0x4] sm:$0xf]
        %v509 = vld [vmem:[#allocation7 + $0x8] sm:$0xf]
        %v510 = vld [vmem:[#allocation7 + $0xc] sm:$0xf]
        %v511 = vld [vmem:[#allocation7 + $0x10] sm:$0xf]
        %v512 = vld [vmem:[#allocation7 + $0x14] sm:$0xf]
        %v513 = vld [vmem:[#allocation7 + $0x18] sm:$0xf]
        %v514 = vld [vmem:[#allocation7 + $0x1c] sm:$0xf]
        %v515 = vld [vmem:[#allocation7 + $0x20] sm:$0xf]
        %v516 = vld [vmem:[#allocation7 + $0x24] sm:$0xf]
        %v517 = vld [vmem:[#allocation7 + $0x28] sm:$0xf]
        %v518 = vld [vmem:[#allocation7 + $0x2c] sm:$0xf]
        %v519 = vld [vmem:[#allocation7 + $0x30] sm:$0xf]
        %v520 = vld [vmem:[#allocation7 + $0x34] sm:$0xf]
        %v521 = vld [vmem:[#allocation7 + $0x38] sm:$0xf]
        %v522 = vld [vmem:[#allocation7 + $0x3c] sm:$0xf]
        %v523 = vld [vmem:[%s4] sm:$0x1]
        %v525 = vlaneseq
        %v526 = vshrl.u32 %v525, 7
        %v527 = vsub.s32 0, %v526
        %v528 = vrot.slane %v523, %v527
        %v546 = vunpack.c.l.b16 %v507
        %v547 = vunpack.c.l.b16 %v508
        %v548 = vunpack.c.l.b16 %v509
        %v549 = vunpack.c.l.b16 %v510
        %v550 = vunpack.c.l.b16 %v511
        %v551 = vunpack.c.l.b16 %v512
        %v552 = vunpack.c.l.b16 %v513
        %v553 = vunpack.c.l.b16 %v514
        %v554 = vunpack.c.l.b16 %v515
        %v555 = vunpack.c.l.b16 %v516
        %v556 = vunpack.c.l.b16 %v517
        %v557 = vunpack.c.l.b16 %v518
        %v558 = vunpack.c.l.b16 %v519
        %v559 = vunpack.c.l.b16 %v520
        %v560 = vunpack.c.l.b16 %v521
        %v561 = vunpack.c.l.b16 %v522
        %v562 = vpack.c.b16 %v547, %v546
        %v563 = vpack.c.b16 %v549, %v548
        %v564 = vpack.c.b16 %v551, %v550
        %v565 = vpack.c.b16 %v553, %v552
        %v566 = vpack.c.b16 %v555, %v554
        %v567 = vpack.c.b16 %v557, %v556
        %v568 = vpack.c.b16 %v559, %v558
        %v569 = vpack.c.b16 %v561, %v560
        %578 = vmatprep.subr.bf16.mxu0 0
        %579 = vmatpush1.bf16.msra.mxu0 %v569
        %580 = vmatprep.subr.bf16.mxu0 0
        %581 = vmatpush1.bf16.msra.mxu0 %v568
        %582 = vmatprep.subr.bf16.mxu0 0
        %583 = vmatpush1.bf16.msra.mxu0 %v567
        %584 = vmatprep.subr.bf16.mxu0 0
        %585 = vmatpush1.bf16.msra.mxu0 %v566
        %586 = vmatprep.subr.bf16.mxu0 0
        %587 = vmatpush1.bf16.msra.mxu0 %v565
        %588 = vmatprep.subr.bf16.mxu0 0
        %589 = vmatpush1.bf16.msra.mxu0 %v564
        %590 = vmatprep.subr.bf16.mxu0 0
        %591 = vmatpush1.bf16.msra.mxu0 %v563
        %592 = vmatprep.subr.bf16.mxu0 0
        %593 = vmatpush1.bf16.msra.mxu0 %v562
        %594 = vmatprep.subr.bf16.mxu0 0
        %595 = vmatpush2.bf16.msra.mxu0 0
        %596 = vmatprep.subr.bf16.mxu0 0
        %597 = vmatpush2.bf16.msra.mxu0 0
        %598 = vmatprep.subr.bf16.mxu0 0
        %599 = vmatpush2.bf16.msra.mxu0 0
        %600 = vmatprep.subr.bf16.mxu0 0
        %601 = vmatpush2.bf16.msra.mxu0 0
        %602 = vmatprep.subr.bf16.mxu0 0
        %603 = vmatpush2.bf16.msra.mxu0 0
        %604 = vmatprep.subr.bf16.mxu0 0
        %605 = vmatpush2.bf16.msra.mxu0 0
        %606 = vmatprep.subr.bf16.mxu0 0
        %607 = vmatpush2.bf16.msra.mxu0 0
        %608 = vmatprep.subr.bf16.mxu0 0
        %609 = vmatpush2.bf16.msra.mxu0 0
        %610 = vmatprep.mubr.bf16.mxu0 0
        %611 = vmatmul.mubr.bf16.gmra.mxu0 %v505
        %v612 = vpop.f32.mrf.mxu0
        %v613 = vadd.f32 %v528, %v612
        %v614 = vpop.f32.mrf.mxu0
        %v615 = vpop.f32.mrf.mxu0
        %v616 = vadd.f32 %v528, %v615
        %v617 = vpop.f32.mrf.mxu0
        %618 = vmatprep.mubr.bf16.mxu0 0
        %619 = vmatmul.mubr.bf16.gmra.mxu0 %v506
        %v620 = vpop.f32.mrf.mxu0
        %v621 = vadd.f32 %v528, %v620
        %v622 = vpop.f32.mrf.mxu0
        %v623 = vpop.f32.mrf.mxu0
        %v624 = vadd.f32 %v528, %v623
        %v625 = vpop.f32.mrf.mxu0
        %626 = vdwg.mxu0
        %627 = vst [vmem:[%s308] sm:$0xff] %v613
        %628 = vst [vmem:[%s308 + $0x8] sm:$0xff] %v616
        %629 = vst [vmem:[%s308 + $0x10] sm:$0xff] %v621
        %630 = vst [vmem:[%s308 + $0x18] sm:$0xff] %v624
        %s631 = sand.u32 %s146, 1
        %s632 = scalar_lea.sflag [#allocation4], %s631
        %s633 = sand.u32 %s146, 1
        %s634 = smul.addr %s633, 32
        %s635 = scalar_lea.vmem [#allocation8], %s634
        %s636 = sand.u32 %s172, 1
        %s637 = scalar_lea.sflag [#allocation10], %s636
        %s638 = sand.u32 %s172, 1
        %s639 = scalar_lea.vmem [#allocation9], %s638
        // Predicated region
        $region53: #{tpu_custom_call.1} parent=39 // pred_check
          %p640 = pneg %p156
        $region54: #{tpu_custom_call.1} parent=39 // pred_check_branch
          %642 = sbr.rel (%p640) target = $region56
        $region55: #{tpu_custom_call.1} parent=39 // pred_region
          %s643 = smul.u32 4, %s28
          %s644 = ssub.s32 9, %s643
          %p645 = scmp.lt.s32.totalorder %s644, 4
          %s646 = scalar_select %p645, %s644, 4
          %s647 = smul.u32 128, %s646
          %s649 = ssub.s32 512, %s647
          %650 = vsyncadd %s632, %s649
          %p651 = scmp.ne.s32.totalorder 0, %s647
          %s652 = smul.addr %s643, 128
          %s653 = scalar_lea.hbm %s5, %s652
          %s654 = smul.u32 8, %s646
          %s655 = sshll.u32 %s635, 4
          %s656 = int_to_ptr.vmem [resolvable:$true] %s655
          %s657 = sshll.u32 %s654, 4
          %661 = dma.vmem_to_hbm [thread:$0]  (%p651), %s656, %s657, %s653, %s632, 128, 128, 8
        $region56: #{tpu_custom_call.1} parent=39 // pred_fallthru
          _
        // Predicated region
        $region57: #{tpu_custom_call.1} parent=39 // pred_check
          %p662 = pneg %p182
        $region58: #{tpu_custom_call.1} parent=39 // pred_check_branch
          %664 = sbr.rel (%p662) target = $region60
        $region59: #{tpu_custom_call.1} parent=39 // pred_region
          %s666 = ssub.s32 16, 16
          %667 = vsyncadd %s637, %s666
          %s668 = smul.addr %s28, 16
          %s669 = scalar_lea.hbm %s6, %s668
          %s671 = sshll.u32 %s639, 4
          %s672 = int_to_ptr.vmem [resolvable:$true] %s671
          %674 = dma.vmem_to_hbm [thread:$0]  %s672, 16, %s669, %s637
        $region60: #{tpu_custom_call.1} parent=39 // pred_fallthru
          _
      $region40: #{tpu_custom_call.1} parent=5 // pred_fallthru
        _
      %p675 = scmp.le.s32.totalorder 2, %s23
      // Predicated region
      $region61: #{tpu_custom_call.1} parent=5 // pred_check
        %p676 = pneg %p675
      $region62: #{tpu_custom_call.1} parent=5 // pred_check_branch
        %678 = sbr.rel (%p676) target = $region64
      $region63: #{tpu_custom_call.1} parent=5 // pred_region
        %s679 = ssub.s32 %s23, 2
        // Predicated region
        $region65: #{tpu_custom_call.1} parent=63 // pred_check
          %p680 = pneg %p162
        $region66: #{tpu_custom_call.1} parent=63 // pred_check_branch
          %682 = sbr.rel (%p680) target = $region68
        $region67: #{tpu_custom_call.1} parent=63 // pred_region
          %s683 = sand.u32 %s147, 1
          %s684 = scalar_lea.sflag [#allocation4], %s683
          %s685 = sand.u32 %s147, 1
          %s686 = smul.addr %s685, 32
          %s687 = scalar_lea.vmem [#allocation8], %s686
          %688 = dma.done %s684, 512
        $region68: #{tpu_custom_call.1} parent=63 // pred_fallthru
          _
        // Predicated region
        $region69: #{tpu_custom_call.1} parent=63 // pred_check
          %p689 = pneg %p188
        $region70: #{tpu_custom_call.1} parent=63 // pred_check_branch
          %691 = sbr.rel (%p689) target = $region72
        $region71: #{tpu_custom_call.1} parent=63 // pred_region
          %s692 = sand.u32 %s173, 1
          %s693 = scalar_lea.sflag [#allocation10], %s692
          %s694 = sand.u32 %s173, 1
          %s695 = scalar_lea.vmem [#allocation9], %s694
          %696 = dma.done %s693, 16
        $region72: #{tpu_custom_call.1} parent=63 // pred_fallthru
          _
      $region64: #{tpu_custom_call.1} parent=5 // pred_fallthru
        _
    $region6: #{tpu_custom_call.1} parent=1 // loop_footer
      %s27 = sadd.s32 1, %s23
    $region7: #{tpu_custom_call.1} parent=1 // loop_footer_branch
      %22 = sbr.rel target = $region3
    $region8: #{tpu_custom_call.1} parent=1 // loop_exit
      _
    %697 = vsyncpa [#allocation3], 1
    %s698 = scalar_lea.sflag [#allocation3], 1
    %699 = vsyncpa %s698, 1
    %700 = vsyncpa [#allocation6], 1
    %701 = vsyncpa [#allocation4], 1
    %s702 = scalar_lea.sflag [#allocation4], 1
    %703 = vsyncpa %s702, 1
    %704 = vsyncpa [#allocation10], 1
    %s705 = scalar_lea.sflag [#allocation10], 1
    %706 = vsyncpa %s705, 1

</llo_original>
